<compile_context>
chip_gen: v5e
topology: v5e:2x2
jax: 0.10.0
libtpu: 0.0.40
codegen_flags: <defaults>
</compile_context>

<pallas_src>
import functools
import inspect

import jax
import jax.numpy as jnp
from jax.experimental import pallas as pl
from jax.experimental.pallas import tpu as pltpu

_HI = jax.lax.Precision.HIGHEST     # used only by the pure-JAX reference


# ----------------------------------------------------------------------------
# small utilities
# ----------------------------------------------------------------------------
@functools.lru_cache(maxsize=None)
def _vmem_limit_bytes():
    """Scoped-VMEM budget derived from the chip (64 MiB v7x, 128 MiB v5e/v6e)."""
    cap = 64 * 1024 * 1024
    try:
        cap = int(pltpu.get_tpu_info().vmem_capacity_bytes)
    except Exception:
        pass
    return int(min(max(cap - 16 * 1024 * 1024, 32 * 1024 * 1024),
                   100 * 1024 * 1024))


def _supports_single_buffering():
    try:
        return (hasattr(pl, "Buffered")
                and "pipeline_mode" in inspect.signature(pl.BlockSpec).parameters)
    except (TypeError, ValueError):
        return False


_SINGLE_BUFFER_WEIGHTS = _supports_single_buffering()


def _weight_spec(a):
    """Grid-invariant operand (constant index_map): single-buffered — the 2nd
    pipeline buffer buys zero overlap but doubles weight VMEM residency."""
    kw = {"pipeline_mode": pl.Buffered(1)} if _SINGLE_BUFFER_WEIGHTS else {}
    return pl.BlockSpec(a.shape, lambda *_, n=a.ndim: (0,) * n, **kw)


def _layernorm(h, w, b, eps=1e-5):
    mu = jnp.mean(h, axis=-1, keepdims=True)
    var = jnp.mean((h - mu) ** 2, axis=-1, keepdims=True)
    return (h - mu) * jax.lax.rsqrt(var + eps) * w + b


def _pick_block_batch(B, T):
    """Batch rows per grid step: pack rows so the matmul M dim is ~>=128
    (fills the MXU at small T) but keep >=2 grid steps when possible so both
    v7x TensorCores get work (v5e/v6e are single-core: packing only helps)."""
    target = max(1, 128 // max(T, 1))
    fitting = [d for d in range(1, B + 1) if B % d == 0 and d <= target]
    best = max(fitting) if fitting else 1
    multi = [d for d in fitting if B // d >= 2]
    if multi:
        best = max(multi)
    return best


def _pick_vocab_tile(v):
    for t in (2048, 1024, 512, 256, 128):
        if v % t == 0:
            return t
    return v                        # small / odd vocab: single full-width tile


# ----------------------------------------------------------------------------
# Pallas kernels
# ----------------------------------------------------------------------------
def decoder_block_kernel(x_ref,
                         ln1w_ref, ln1b_ref,
                         w1_ref, b1_ref, w2_ref, b2_ref,
                         ln2w_ref, ln2b_ref,
                         qkvw_ref, qkvb_ref,
                         projw_ref, projb_ref,
                         o_ref,
                         attn_ref,          # VMEM scratch (Bb, T, C) f32
                         *, n_heads):
    xb = x_ref[...]                                    # (Bb, T, C) f32
    Bb, T, C = xb.shape
    hd = C // n_heads
    scale = 1.0 / (float(hd) ** 0.5 + 1e-5)            # matches reference module
    x2 = xb.reshape(Bb * T, C)                         # pack rows -> fill MXU M

    # ---- x = x + MLP(LN1(x)) ----  (dropout == identity)
    h = _layernorm(x2, ln1w_ref[...], ln1b_ref[...])
    h = jnp.dot(h.astype(jnp.bfloat16), w1_ref[...],
                preferred_element_type=jnp.float32) + b1_ref[...]
    h = jnp.maximum(h, 0.0)
    h = jnp.dot(h.astype(jnp.bfloat16), w2_ref[...],
                preferred_element_type=jnp.float32) + b2_ref[...]
    x2 = x2 + h

    # ---- x = x + MHSA(LN2(x)) ----
    y = _layernorm(x2, ln2w_ref[...], ln2b_ref[...])
    # One lane-dense QKV matmul for ALL heads (block-diagonal weight built at
    # prep time).  Columns: [Q head0..H-1 | K head0..H-1 | V head0..H-1]
    qkv = jnp.dot(y.astype(jnp.bfloat16), qkvw_ref[...],
                  preferred_element_type=jnp.float32) + qkvb_ref[...]
    qkv = qkv.reshape(Bb, T, 3 * C)

    row = jax.lax.broadcasted_iota(jnp.int32, (T, T), 0)
    col = jax.lax.broadcasted_iota(jnp.int32, (T, T), 1)
    causal = (row >= col)[None]                         # (1, T, T)
    neg_big = jnp.float32(-1e30)                        # finite (padding-safe)

    for hidx in range(n_heads):                         # statically unrolled
        lo = hidx * hd
        q = qkv[:, :, lo:lo + hd].astype(jnp.bfloat16)
        k = qkv[:, :, C + lo:C + lo + hd].astype(jnp.bfloat16)
        v = qkv[:, :, 2 * C + lo:2 * C + lo + hd].astype(jnp.bfloat16)
        # batched q @ k^T over the packed sequences; softmax stays f32
        s = jnp.einsum('bqd,bkd->bqk', q, k,
                       preferred_element_type=jnp.float32) * scale
        s = jnp.where(causal, s, neg_big)
        s = s - jnp.max(s, axis=-1, keepdims=True)
        e = jnp.exp(s)
        p = e * pl.reciprocal(jnp.sum(e, axis=-1, keepdims=True), approx=True)
        # write the head's output straight into its slice of the scratch tile
        attn_ref[:, :, lo:lo + hd] = jnp.einsum(
            'bqk,bkd->bqd', p.astype(jnp.bfloat16), v,
            preferred_element_type=jnp.float32)

    mh = jnp.dot(attn_ref[...].reshape(Bb * T, C).astype(jnp.bfloat16),
                 projw_ref[...],
                 preferred_element_type=jnp.float32) + projb_ref[...]
    o_ref[...] = (x2 + mh).reshape(Bb, T, C)            # proj dropout == identity


def lm_head_kernel(x_ref, lnw_ref, lnb_ref, w_ref, b_ref, o_ref, h_ref):
    # x is grid-invariant; compute the final LayerNorm exactly once and keep
    # the bf16 result resident while vocab tiles stream past.
    @pl.when(pl.program_id(0) == 0)
    def _():
        h_ref[...] = _layernorm(x_ref[...], lnw_ref[...],
                                lnb_ref[...]).astype(jnp.bfloat16)
    o_ref[...] = jnp.dot(h_ref[...], w_ref[...],
                         preferred_element_type=jnp.float32) + b_ref[...]


# ----------------------------------------------------------------------------
# Pallas wrappers
# ----------------------------------------------------------------------------
def decoder_block_pallas(x, p, n_heads):
    B, T, C = x.shape
    bb = _pick_block_batch(B, T)
    args = (p["ln1_w"], p["ln1_b"], p["w1_t"], p["b1"], p["w2_t"], p["b2"],
            p["ln2_w"], p["ln2_b"], p["qkv_w"], p["qkv_b"],
            p["proj_w_t"], p["proj_b"])
    return pl.pallas_call(
        functools.partial(decoder_block_kernel, n_heads=n_heads),
        out_shape=jax.ShapeDtypeStruct((B, T, C), x.dtype),
        grid=(B // bb,),
        in_specs=[pl.BlockSpec((bb, T, C), lambda i: (i, 0, 0))]
                 + [_weight_spec(a) for a in args],
        out_specs=pl.BlockSpec((bb, T, C), lambda i: (i, 0, 0)),
        scratch_shapes=[pltpu.VMEM((bb, T, C), jnp.float32)],
        input_output_aliases={0: 0},          # out = x + delta reuses x's buffer
        compiler_params=pltpu.CompilerParams(
            dimension_semantics=("parallel",),
            vmem_limit_bytes=_vmem_limit_bytes()),
    )(x, *args)


def lm_head_pallas(x, ln_w, ln_b, lm_w_t, lm_b):
    B, T, C = x.shape
    V = lm_w_t.shape[1]
    tv = _pick_vocab_tile(V)
    M = B * T
    x2 = x.reshape(M, C)
    out = pl.pallas_call(
        lm_head_kernel,
        out_shape=jax.ShapeDtypeStruct((M, V), x.dtype),
        grid=(V // tv,),
        in_specs=[_weight_spec(x2),                         # x resident, 1-buffered
                  _weight_spec(ln_w),
                  _weight_spec(ln_b),
                  pl.BlockSpec((C, tv), lambda j: (0, j)),  # weight streams once
                  pl.BlockSpec((1, tv), lambda j: (0, j))],
        out_specs=pl.BlockSpec((M, tv), lambda j: (0, j)),
        scratch_shapes=[pltpu.VMEM((M, C), jnp.bfloat16)],
        compiler_params=pltpu.CompilerParams(
            # "arbitrary": the LN-hoist scratch must be produced by the same
            # core that consumes it (no megacore split of the vocab axis).
            dimension_semantics=("arbitrary",),
            vmem_limit_bytes=_vmem_limit_bytes()),
    )(x2, ln_w, ln_b, lm_w_t, lm_b)
    return out.reshape(B, T, V)


def transformer_forward(idxs, kp, n_heads):
    T = idxs.shape[1]
    x = jnp.take(kp["tok_emb"], idxs, axis=0) + kp["pos_emb"][:T][None, :, :]
    for bp in kp["blocks"]:
        x = decoder_block_pallas(x, bp, n_heads)
    return lm_head_pallas(x, kp["ln_w"], kp["ln_b"], kp["lm_w_t"], kp["lm_b"])


# ----------------------------------------------------------------------------
# one-time parameter layout prep (transposes + block-diag QKV fusion + bf16)
# ----------------------------------------------------------------------------
def _combine_qkv(qkv_w, qkv_b):
    """Per-head Linear(hd, 3hd) params (H, 3hd, hd)/(H, 1, 3hd) -> block-diagonal
    (C, 3C) weight and (1, 3C) bias, columns laid out [Q_allheads | K | V]."""
    H, _, hd = qkv_w.shape
    C = H * hd
    w = jnp.zeros((C, 3 * C), jnp.float32)
    b = jnp.zeros((1, 3 * C), jnp.float32)
    for h in range(H):
        wt = qkv_w[h].T                              # (hd, 3hd): [q | k | v]
        rows = slice(h * hd, (h + 1) * hd)
        for comp in range(3):                        # 0:q 1:k 2:v
            cols = slice(comp * C + h * hd, comp * C + (h + 1) * hd)
            w = w.at[rows, cols].set(wt[:, comp * hd:(comp + 1) * hd])
            b = b.at[:, cols].set(qkv_b[h][:, comp * hd:(comp + 1) * hd])
    return w, b


def prepare_kernel_params(params):
    """All transposes / fusions / bf16 casts happen here, never in-kernel."""
    bf16 = jnp.bfloat16
    kblocks = []
    for bp in params["blocks"]:
        qkv_w, qkv_b = _combine_qkv(bp["qkv_w"], bp["qkv_b"])
        kblocks.append(dict(
            ln1_w=bp["ln1_w"], ln1_b=bp["ln1_b"],
            w1_t=bp["w1"].T.astype(bf16), b1=bp["b1"],
            w2_t=bp["w2"].T.astype(bf16), b2=bp["b2"],
            ln2_w=bp["ln2_w"], ln2_b=bp["ln2_b"],
            qkv_w=qkv_w.astype(bf16), qkv_b=qkv_b,
            proj_w_t=bp["proj_w"].T.astype(bf16), proj_b=bp["proj_b"]))
    return dict(tok_emb=params["tok_emb"], pos_emb=params["pos_emb"],
                blocks=kblocks, ln_w=params["ln_w"], ln_b=params["ln_b"],
                lm_w_t=params["lm_w"].T.astype(bf16), lm_b=params["lm_b"])


# ----------------------------------------------------------------------------
# pure-JAX reference (PyTorch-convention params, HIGHEST precision)
# ----------------------------------------------------------------------------
def _ref_block(x, p):
    h = _layernorm(x, p["ln1_w"], p["ln1_b"])
    h = jnp.maximum(jnp.einsum("btc,dc->btd", h, p["w1"], precision=_HI) + p["b1"], 0.0)
    h = jnp.einsum("btc,dc->btd", h, p["w2"], precision=_HI) + p["b2"]
    x = x + h

    y = _layernorm(x, p["ln2_w"], p["ln2_b"])
    H, three_hd, hd = p["qkv_w"].shape
    T = x.shape[1]
    scale = 1.0 / (float(hd) ** 0.5 + 1e-5)
    keep = jnp.tril(jnp.ones((T, T))) != 0
    outs = []
    for hh in range(H):
        xh = y[..., hh * hd:(hh + 1) * hd]
        qkv = jnp.einsum("btd,ed->bte", xh, p["qkv_w"][hh], precision=_HI) + p["qkv_b"][hh]
        q, k, v = jnp.split(qkv, 3, axis=-1)
        att = jnp.einsum("btd,bsd->bts", q, k, precision=_HI) * scale
        att = jnp.where(keep, att, -jnp.inf)
        att = jax.nn.softmax(att, axis=-1)
        outs.append(jnp.einsum("bts,bsd->btd", att, v, precision=_HI))
    o = jnp.concatenate(outs, axis=-1)
    o = jnp.einsum("btc,dc->btd", o, p["proj_w"], precision=_HI) + p["proj_b"]
    return x + o


def reference_forward(idxs, params):
    T = idxs.shape[1]
    x = jnp.take(params["tok_emb"], idxs, axis=0) + params["pos_emb"][:T][None, :, :]
    for bp in params["blocks"]:
        x = _ref_block(x, bp)
    h = _layernorm(x, params["ln_w"], params["ln_b"])
    return jnp.einsum("btc,vc->btv", h, params["lm_w"], precision=_HI) + params["lm_b"]


# ----------------------------------------------------------------------------
# deterministic parameter init (PyTorch nn.Linear-like shapes/convention)
# ----------------------------------------------------------------------------
def _linear_init(key, out_dim, in_dim):
    k1, k2 = jax.random.split(key)
    bound = 1.0 / (in_dim ** 0.5)
    w = jax.random.uniform(k1, (out_dim, in_dim), jnp.float32, -bound, bound)
    b = jax.random.uniform(k2, (1, out_dim), jnp.float32, -bound, bound)
    return w, b


def init_params(key, vocab_size, context_length, depth, embed_dim, n_heads):
    hd = embed_dim // n_heads
    keys = jax.random.split(key, 3 + depth)
    params = {
        "tok_emb": 0.02 * jax.random.normal(keys[0], (vocab_size, embed_dim), jnp.float32),
        "pos_emb": 0.02 * jax.random.normal(keys[1], (context_length, embed_dim), jnp.float32),
    }
    blocks = []
    for d in range(depth):
        bk = jax.random.split(keys[2 + d], 4)
        w1, b1 = _linear_init(bk[0], 4 * embed_dim, embed_dim)
        w2, b2 = _linear_init(bk[1], embed_dim, 4 * embed_dim)
        qkv_ws, qkv_bs = [], []
        for h in range(n_heads):
            w, b = _linear_init(jax.random.fold_in(bk[2], h), 3 * hd, hd)
            qkv_ws.append(w)
            qkv_bs.append(b)
        proj_w, proj_b = _linear_init(bk[3], embed_dim, embed_dim)
        blocks.append(dict(
            ln1_w=jnp.ones((1, embed_dim), jnp.float32),
            ln1_b=jnp.zeros((1, embed_dim), jnp.float32),
            w1=w1, b1=b1, w2=w2, b2=b2,
            ln2_w=jnp.ones((1, embed_dim), jnp.float32),
            ln2_b=jnp.zeros((1, embed_dim), jnp.float32),
            qkv_w=jnp.stack(qkv_ws),      # (H, 3*hd, hd)
            qkv_b=jnp.stack(qkv_bs),      # (H, 1, 3*hd)
            proj_w=proj_w, proj_b=proj_b))
    params["blocks"] = blocks
    params["ln_w"] = jnp.ones((1, embed_dim), jnp.float32)
    params["ln_b"] = jnp.zeros((1, embed_dim), jnp.float32)
    lm_w, lm_b = _linear_init(keys[2 + depth], vocab_size, embed_dim)
    params["lm_w"] = lm_w
    params["lm_b"] = lm_b
    return params


# ----------------------------------------------------------------------------
if __name__ == "__main__":
    vocab_size, context_length, depth, embed_dim, n_heads = 64, 16, 2, 32, 4
    B, T = 2, 8

    root = jax.random.PRNGKey(0)
    k_params, k_idx = jax.random.split(root)
    params = init_params(k_params, vocab_size, context_length, depth, embed_dim, n_heads)
    kparams = prepare_kernel_params(params)
    idxs = jax.random.randint(k_idx, (B, T), 0, vocab_size, dtype=jnp.int32)

    fwd = jax.jit(lambda i, p: transformer_forward(i, p, n_heads))
    logits = jax.block_until_ready(fwd(idxs, kparams))

    assert logits.shape == (B, T, vocab_size)
    assert bool(jnp.all(jnp.isfinite(logits)))

    ref = reference_forward(idxs, params)
    err = float(jnp.max(jnp.abs(logits - ref)))
    scale = float(jnp.max(jnp.abs(ref))) + 1.0
    assert err < 5e-2 * scale, f"mismatch vs reference: max abs err {err}"

    print("KERNEL_OK")
</pallas_src>

<mosaic_0001>
module attributes {stable_mosaic.version = 11 : i64} {
  func.func @lm_head_kernel(%arg0: i32, %arg1: memref<16x32xf32, #tpu.memory_space<vmem>>, %arg2: memref<1x32xf32, #tpu.memory_space<vmem>>, %arg3: memref<1x32xf32, #tpu.memory_space<vmem>>, %arg4: memref<32x64xbf16, #tpu.memory_space<vmem>>, %arg5: memref<1x64xf32, #tpu.memory_space<vmem>>, %arg6: memref<16x64xf32, #tpu.memory_space<vmem>>, %arg7: memref<16x32xbf16, #tpu.memory_space<vmem>>) attributes {dimension_semantics = [#tpu.dimension_semantics<arbitrary>], iteration_bounds = array<i64: 1>, scalar_prefetch = 0 : i64, scratch_operands = 1 : i64, tpu.core_type = #tpu.core_type<tc>, window_params = [{pipeline_mode = #tpu.pipeline_mode<synchronous>, transform_indices = @transform_0, window_bounds = array<i64: 16, 32>}, {pipeline_mode = #tpu.pipeline_mode<synchronous>, transform_indices = @transform_1, window_bounds = array<i64: 1, 32>}, {pipeline_mode = #tpu.pipeline_mode<synchronous>, transform_indices = @transform_2, window_bounds = array<i64: 1, 32>}, {transform_indices = @transform_3, window_bounds = array<i64: 32, 64>}, {transform_indices = @transform_4, window_bounds = array<i64: 1, 64>}, {transform_indices = @transform_5, window_bounds = array<i64: 16, 64>}]} {
    %c0_i32 = arith.constant 0 : i32
    %0 = arith.cmpi eq, %arg0, %c0_i32 : i32
    %1 = arith.extui %0 : i1 to i32
    %c0_i32_0 = arith.constant 0 : i32
    %2 = arith.cmpi ne, %1, %c0_i32_0 : i32
    scf.if %2 {
      %c0_8 = arith.constant 0 : index
      %c0_9 = arith.constant 0 : index
      %10 = vector.load %arg1[%c0_8, %c0_9] : memref<16x32xf32, #tpu.memory_space<vmem>>, vector<16x32xf32>
      %c0_10 = arith.constant 0 : index
      %c0_11 = arith.constant 0 : index
      %11 = vector.load %arg2[%c0_10, %c0_11] : memref<1x32xf32, #tpu.memory_space<vmem>>, vector<1x32xf32>
      %c0_12 = arith.constant 0 : index
      %c0_13 = arith.constant 0 : index
      %12 = vector.load %arg3[%c0_12, %c0_13] : memref<1x32xf32, #tpu.memory_space<vmem>>, vector<1x32xf32>
      %cst_14 = arith.constant dense<0.000000e+00> : vector<16xf32>
      %13 = vector.multi_reduction <add>, %10, %cst_14 [1] : vector<16x32xf32> to vector<16xf32>
      %14 = vector.shape_cast %13 : vector<16xf32> to vector<16x1xf32>
      %cst_15 = arith.constant 3.200000e+01 : f32
      %15 = vector.broadcast %cst_15 : f32 to vector<16x1xf32>
      %16 = arith.divf %14, %15 : vector<16x1xf32>
      %17 = vector.broadcast %16 : vector<16x1xf32> to vector<16x32xf32>
      %18 = arith.subf %10, %17 : vector<16x32xf32>
      %19 = arith.mulf %18, %18 : vector<16x32xf32>
      %cst_16 = arith.constant dense<0.000000e+00> : vector<16xf32>
      %20 = vector.multi_reduction <add>, %19, %cst_16 [1] : vector<16x32xf32> to vector<16xf32>
      %21 = vector.shape_cast %20 : vector<16xf32> to vector<16x1xf32>
      %cst_17 = arith.constant 3.200000e+01 : f32
      %22 = vector.broadcast %cst_17 : f32 to vector<16x1xf32>
      %23 = arith.divf %21, %22 : vector<16x1xf32>
      %24 = vector.broadcast %16 : vector<16x1xf32> to vector<16x32xf32>
      %25 = arith.subf %10, %24 : vector<16x32xf32>
      %cst_18 = arith.constant 9.99999974E-6 : f32
      %26 = vector.broadcast %cst_18 : f32 to vector<16x1xf32>
      %27 = arith.addf %23, %26 : vector<16x1xf32>
      %28 = math.rsqrt %27 : vector<16x1xf32>
      %29 = vector.broadcast %28 : vector<16x1xf32> to vector<16x32xf32>
      %30 = arith.mulf %25, %29 : vector<16x32xf32>
      %31 = vector.broadcast %11 : vector<1x32xf32> to vector<16x32xf32>
      %32 = arith.mulf %30, %31 : vector<16x32xf32>
      %33 = vector.broadcast %12 : vector<1x32xf32> to vector<16x32xf32>
      %34 = arith.addf %32, %33 : vector<16x32xf32>
      %35 = arith.truncf %34 : vector<16x32xf32> to vector<16x32xbf16>
      %c0_19 = arith.constant 0 : index
      %c0_20 = arith.constant 0 : index
      %36 = vector.load %arg7[%c0_19, %c0_20] : memref<16x32xbf16, #tpu.memory_space<vmem>>, vector<16x32xbf16>
      tpu.vector_store %arg7[%c0_19, %c0_20], %35 {strides = array<i32>} : memref<16x32xbf16, #tpu.memory_space<vmem>>, vector<16x32xbf16>,
    } else {
    }
    %c0 = arith.constant 0 : index
    %c0_1 = arith.constant 0 : index
    %3 = vector.load %arg7[%c0, %c0_1] : memref<16x32xbf16, #tpu.memory_space<vmem>>, vector<16x32xbf16>
    %c0_2 = arith.constant 0 : index
    %c0_3 = arith.constant 0 : index
    %4 = vector.load %arg4[%c0_2, %c0_3] : memref<32x64xbf16, #tpu.memory_space<vmem>>, vector<32x64xbf16>
    %cst = arith.constant dense<0.000000e+00> : vector<16x64xf32>
    %5 = tpu.matmul %3, %4, %cst {dimension_numbers = #tpu.dot_dimension_numbers<[1], [0], [0], [1], [0, 0, 1, 1], [], []>} : vector<16x32xbf16>, vector<32x64xbf16>, vector<16x64xf32> -> vector<16x64xf32>
    %c0_4 = arith.constant 0 : index
    %c0_5 = arith.constant 0 : index
    %6 = vector.load %arg5[%c0_4, %c0_5] : memref<1x64xf32, #tpu.memory_space<vmem>>, vector<1x64xf32>
    %7 = vector.broadcast %6 : vector<1x64xf32> to vector<16x64xf32>
    %8 = arith.addf %5, %7 : vector<16x64xf32>
    %c0_6 = arith.constant 0 : index
    %c0_7 = arith.constant 0 : index
    %9 = vector.load %arg6[%c0_6, %c0_7] : memref<16x64xf32, #tpu.memory_space<vmem>>, vector<16x64xf32>
    tpu.vector_store %arg6[%c0_6, %c0_7], %8 {strides = array<i32>} : memref<16x64xf32, #tpu.memory_space<vmem>>, vector<16x64xf32>,
    return
  }
  func.func @transform_0(%arg0: i32) -> (i32, i32) {
    %c0_i32 = arith.constant 0 : i32
    %c0_i32_0 = arith.constant 0 : i32
    %c0_i32_1 = arith.constant 0 : i32
    return %c0_i32, %c0_i32_0 : i32, i32
  }
  func.func @transform_1(%arg0: i32) -> (i32, i32) {
    %c0_i32 = arith.constant 0 : i32
    %c0_i32_0 = arith.constant 0 : i32
    %c0_i32_1 = arith.constant 0 : i32
    return %c0_i32, %c0_i32_0 : i32, i32
  }
  func.func @transform_2(%arg0: i32) -> (i32, i32) {
    %c0_i32 = arith.constant 0 : i32
    %c0_i32_0 = arith.constant 0 : i32
    %c0_i32_1 = arith.constant 0 : i32
    return %c0_i32, %c0_i32_0 : i32, i32
  }
  func.func @transform_3(%arg0: i32) -> (i32, i32) {
    %c0_i32 = arith.constant 0 : i32
    %c0_i32_0 = arith.constant 0 : i32
    return %c0_i32, %arg0 : i32, i32
  }
  func.func @transform_4(%arg0: i32) -> (i32, i32) {
    %c0_i32 = arith.constant 0 : i32
    %c0_i32_0 = arith.constant 0 : i32
    return %c0_i32, %arg0 : i32, i32
  }
  func.func @transform_5(%arg0: i32) -> (i32, i32) {
    %c0_i32 = arith.constant 0 : i32
    %c0_i32_0 = arith.constant 0 : i32
    return %c0_i32, %arg0 : i32, i32
  }
}

module attributes {stable_mosaic.version = 11 : i64} {
  func.func @decoder_block_kernel(%arg0: i32, %arg1: memref<1x8x32xf32, #tpu.memory_space<vmem>>, %arg2: memref<1x32xf32, #tpu.memory_space<vmem>>, %arg3: memref<1x32xf32, #tpu.memory_space<vmem>>, %arg4: memref<32x128xbf16, #tpu.memory_space<vmem>>, %arg5: memref<1x128xf32, #tpu.memory_space<vmem>>, %arg6: memref<128x32xbf16, #tpu.memory_space<vmem>>, %arg7: memref<1x32xf32, #tpu.memory_space<vmem>>, %arg8: memref<1x32xf32, #tpu.memory_space<vmem>>, %arg9: memref<1x32xf32, #tpu.memory_space<vmem>>, %arg10: memref<32x96xbf16, #tpu.memory_space<vmem>>, %arg11: memref<1x96xf32, #tpu.memory_space<vmem>>, %arg12: memref<32x32xbf16, #tpu.memory_space<vmem>>, %arg13: memref<1x32xf32, #tpu.memory_space<vmem>>, %arg14: memref<1x8x32xf32, #tpu.memory_space<vmem>>, %arg15: memref<1x8x32xf32, #tpu.memory_space<vmem>>) attributes {dimension_semantics = [#tpu.dimension_semantics<parallel>], iteration_bounds = array<i64: 2>, scalar_prefetch = 0 : i64, scratch_operands = 1 : i64, tpu.core_type = #tpu.core_type<tc>, window_params = [{transform_indices = @transform_0, window_bounds = array<i64: 1, 8, 32>}, {pipeline_mode = #tpu.pipeline_mode<synchronous>, transform_indices = @transform_1, window_bounds = array<i64: 1, 32>}, {pipeline_mode = #tpu.pipeline_mode<synchronous>, transform_indices = @transform_2, window_bounds = array<i64: 1, 32>}, {pipeline_mode = #tpu.pipeline_mode<synchronous>, transform_indices = @transform_3, window_bounds = array<i64: 32, 128>}, {pipeline_mode = #tpu.pipeline_mode<synchronous>, transform_indices = @transform_4, window_bounds = array<i64: 1, 128>}, {pipeline_mode = #tpu.pipeline_mode<synchronous>, transform_indices = @transform_5, window_bounds = array<i64: 128, 32>}, {pipeline_mode = #tpu.pipeline_mode<synchronous>, transform_indices = @transform_6, window_bounds = array<i64: 1, 32>}, {pipeline_mode = #tpu.pipeline_mode<synchronous>, transform_indices = @transform_7, window_bounds = array<i64: 1, 32>}, {pipeline_mode = #tpu.pipeline_mode<synchronous>, transform_indices = @transform_8, window_bounds = array<i64: 1, 32>}, {pipeline_mode = #tpu.pipeline_mode<synchronous>, transform_indices = @transform_9, window_bounds = array<i64: 32, 96>}, {pipeline_mode = #tpu.pipeline_mode<synchronous>, transform_indices = @transform_10, window_bounds = array<i64: 1, 96>}, {pipeline_mode = #tpu.pipeline_mode<synchronous>, transform_indices = @transform_11, window_bounds = array<i64: 32, 32>}, {pipeline_mode = #tpu.pipeline_mode<synchronous>, transform_indices = @transform_12, window_bounds = array<i64: 1, 32>}, {transform_indices = @transform_13, window_bounds = array<i64: 1, 8, 32>}]} {
    %c0 = arith.constant 0 : index
    %c0_0 = arith.constant 0 : index
    %c0_1 = arith.constant 0 : index
    %0 = vector.load %arg1[%c0, %c0_0, %c0_1] : memref<1x8x32xf32, #tpu.memory_space<vmem>>, vector<1x8x32xf32>
    %1 = vector.shape_cast %0 : vector<1x8x32xf32> to vector<8x32xf32>
    %c0_2 = arith.constant 0 : index
    %c0_3 = arith.constant 0 : index
    %2 = vector.load %arg2[%c0_2, %c0_3] : memref<1x32xf32, #tpu.memory_space<vmem>>, vector<1x32xf32>
    %c0_4 = arith.constant 0 : index
    %c0_5 = arith.constant 0 : index
    %3 = vector.load %arg3[%c0_4, %c0_5] : memref<1x32xf32, #tpu.memory_space<vmem>>, vector<1x32xf32>
    %cst = arith.constant dense<0.000000e+00> : vector<8xf32>
    %4 = vector.multi_reduction <add>, %1, %cst [1] : vector<8x32xf32> to vector<8xf32>
    %5 = vector.shape_cast %4 : vector<8xf32> to vector<8x1xf32>
    %cst_6 = arith.constant 3.200000e+01 : f32
    %6 = vector.broadcast %cst_6 : f32 to vector<8x1xf32>
    %7 = arith.divf %5, %6 : vector<8x1xf32>
    %8 = vector.broadcast %7 : vector<8x1xf32> to vector<8x32xf32>
    %9 = arith.subf %1, %8 : vector<8x32xf32>
    %10 = arith.mulf %9, %9 : vector<8x32xf32>
    %cst_7 = arith.constant dense<0.000000e+00> : vector<8xf32>
    %11 = vector.multi_reduction <add>, %10, %cst_7 [1] : vector<8x32xf32> to vector<8xf32>
    %12 = vector.shape_cast %11 : vector<8xf32> to vector<8x1xf32>
    %cst_8 = arith.constant 3.200000e+01 : f32
    %13 = vector.broadcast %cst_8 : f32 to vector<8x1xf32>
    %14 = arith.divf %12, %13 : vector<8x1xf32>
    %15 = vector.broadcast %7 : vector<8x1xf32> to vector<8x32xf32>
    %16 = arith.subf %1, %15 : vector<8x32xf32>
    %cst_9 = arith.constant 9.99999974E-6 : f32
    %17 = vector.broadcast %cst_9 : f32 to vector<8x1xf32>
    %18 = arith.addf %14, %17 : vector<8x1xf32>
    %19 = math.rsqrt %18 : vector<8x1xf32>
    %20 = vector.broadcast %19 : vector<8x1xf32> to vector<8x32xf32>
    %21 = arith.mulf %16, %20 : vector<8x32xf32>
    %22 = vector.broadcast %2 : vector<1x32xf32> to vector<8x32xf32>
    %23 = arith.mulf %21, %22 : vector<8x32xf32>
    %24 = vector.broadcast %3 : vector<1x32xf32> to vector<8x32xf32>
    %25 = arith.addf %23, %24 : vector<8x32xf32>
    %26 = arith.truncf %25 : vector<8x32xf32> to vector<8x32xbf16>
    %c0_10 = arith.constant 0 : index
    %c0_11 = arith.constant 0 : index
    %27 = vector.load %arg4[%c0_10, %c0_11] : memref<32x128xbf16, #tpu.memory_space<vmem>>, vector<32x128xbf16>
    %cst_12 = arith.constant dense<0.000000e+00> : vector<8x128xf32>
    %28 = tpu.matmul %26, %27, %cst_12 {dimension_numbers = #tpu.dot_dimension_numbers<[1], [0], [0], [1], [0, 0, 1, 1], [], []>} : vector<8x32xbf16>, vector<32x128xbf16>, vector<8x128xf32> -> vector<8x128xf32>
    %c0_13 = arith.constant 0 : index
    %c0_14 = arith.constant 0 : index
    %29 = vector.load %arg5[%c0_13, %c0_14] : memref<1x128xf32, #tpu.memory_space<vmem>>, vector<1x128xf32>
    %30 = vector.broadcast %29 : vector<1x128xf32> to vector<8x128xf32>
    %31 = arith.addf %28, %30 : vector<8x128xf32>
    %cst_15 = arith.constant 0.000000e+00 : f32
    %32 = vector.broadcast %cst_15 : f32 to vector<8x128xf32>
    %33 = arith.maximumf %31, %32 : vector<8x128xf32>
    %34 = arith.truncf %33 : vector<8x128xf32> to vector<8x128xbf16>
    %c0_16 = arith.constant 0 : index
    %c0_17 = arith.constant 0 : index
    %35 = vector.load %arg6[%c0_16, %c0_17] : memref<128x32xbf16, #tpu.memory_space<vmem>>, vector<128x32xbf16>
    %cst_18 = arith.constant dense<0.000000e+00> : vector<8x32xf32>
    %36 = tpu.matmul %34, %35, %cst_18 {dimension_numbers = #tpu.dot_dimension_numbers<[1], [0], [0], [1], [0, 0, 1, 1], [], []>} : vector<8x128xbf16>, vector<128x32xbf16>, vector<8x32xf32> -> vector<8x32xf32>
    %c0_19 = arith.constant 0 : index
    %c0_20 = arith.constant 0 : index
    %37 = vector.load %arg7[%c0_19, %c0_20] : memref<1x32xf32, #tpu.memory_space<vmem>>, vector<1x32xf32>
    %38 = vector.broadcast %37 : vector<1x32xf32> to vector<8x32xf32>
    %39 = arith.addf %36, %38 : vector<8x32xf32>
    %40 = arith.addf %1, %39 : vector<8x32xf32>
    %c0_21 = arith.constant 0 : index
    %c0_22 = arith.constant 0 : index
    %41 = vector.load %arg8[%c0_21, %c0_22] : memref<1x32xf32, #tpu.memory_space<vmem>>, vector<1x32xf32>
    %c0_23 = arith.constant 0 : index
    %c0_24 = arith.constant 0 : index
    %42 = vector.load %arg9[%c0_23, %c0_24] : memref<1x32xf32, #tpu.memory_space<vmem>>, vector<1x32xf32>
    %cst_25 = arith.constant dense<0.000000e+00> : vector<8xf32>
    %43 = vector.multi_reduction <add>, %40, %cst_25 [1] : vector<8x32xf32> to vector<8xf32>
    %44 = vector.shape_cast %43 : vector<8xf32> to vector<8x1xf32>
    %cst_26 = arith.constant 3.200000e+01 : f32
    %45 = vector.broadcast %cst_26 : f32 to vector<8x1xf32>
    %46 = arith.divf %44, %45 : vector<8x1xf32>
    %47 = vector.broadcast %46 : vector<8x1xf32> to vector<8x32xf32>
    %48 = arith.subf %40, %47 : vector<8x32xf32>
    %49 = arith.mulf %48, %48 : vector<8x32xf32>
    %cst_27 = arith.constant dense<0.000000e+00> : vector<8xf32>
    %50 = vector.multi_reduction <add>, %49, %cst_27 [1] : vector<8x32xf32> to vector<8xf32>
    %51 = vector.shape_cast %50 : vector<8xf32> to vector<8x1xf32>
    %cst_28 = arith.constant 3.200000e+01 : f32
    %52 = vector.broadcast %cst_28 : f32 to vector<8x1xf32>
    %53 = arith.divf %51, %52 : vector<8x1xf32>
    %54 = vector.broadcast %46 : vector<8x1xf32> to vector<8x32xf32>
    %55 = arith.subf %40, %54 : vector<8x32xf32>
    %cst_29 = arith.constant 9.99999974E-6 : f32
    %56 = vector.broadcast %cst_29 : f32 to vector<8x1xf32>
    %57 = arith.addf %53, %56 : vector<8x1xf32>
    %58 = math.rsqrt %57 : vector<8x1xf32>
    %59 = vector.broadcast %58 : vector<8x1xf32> to vector<8x32xf32>
    %60 = arith.mulf %55, %59 : vector<8x32xf32>
    %61 = vector.broadcast %41 : vector<1x32xf32> to vector<8x32xf32>
    %62 = arith.mulf %60, %61 : vector<8x32xf32>
    %63 = vector.broadcast %42 : vector<1x32xf32> to vector<8x32xf32>
    %64 = arith.addf %62, %63 : vector<8x32xf32>
    %65 = arith.truncf %64 : vector<8x32xf32> to vector<8x32xbf16>
    %c0_30 = arith.constant 0 : index
    %c0_31 = arith.constant 0 : index
    %66 = vector.load %arg10[%c0_30, %c0_31] : memref<32x96xbf16, #tpu.memory_space<vmem>>, vector<32x96xbf16>
    %cst_32 = arith.constant dense<0.000000e+00> : vector<8x96xf32>
    %67 = tpu.matmul %65, %66, %cst_32 {dimension_numbers = #tpu.dot_dimension_numbers<[1], [0], [0], [1], [0, 0, 1, 1], [], []>} : vector<8x32xbf16>, vector<32x96xbf16>, vector<8x96xf32> -> vector<8x96xf32>
    %c0_33 = arith.constant 0 : index
    %c0_34 = arith.constant 0 : index
    %68 = vector.load %arg11[%c0_33, %c0_34] : memref<1x96xf32, #tpu.memory_space<vmem>>, vector<1x96xf32>
    %69 = vector.broadcast %68 : vector<1x96xf32> to vector<8x96xf32>
    %70 = arith.addf %67, %69 : vector<8x96xf32>
    %71 = vector.shape_cast %70 : vector<8x96xf32> to vector<1x8x96xf32>
    %72 = tpu.iota {dimensions = array<i32: 0>} : vector<8x8xi32>
    %73 = tpu.iota {dimensions = array<i32: 1>} : vector<8x8xi32>
    %74 = arith.cmpi sge, %72, %73 : vector<8x8xi32>
    %75 = vector.shape_cast %74 : vector<8x8xi1> to vector<1x8x8xi1>
    %76 = vector.extract_strided_slice %71 {offsets = [0, 0, 0], sizes = [1, 8, 8], strides = [1, 1, 1]} : vector<1x8x96xf32> to vector<1x8x8xf32>
    %77 = arith.truncf %76 : vector<1x8x8xf32> to vector<1x8x8xbf16>
    %78 = vector.extract_strided_slice %71 {offsets = [0, 0, 32], sizes = [1, 8, 8], strides = [1, 1, 1]} : vector<1x8x96xf32> to vector<1x8x8xf32>
    %79 = arith.truncf %78 : vector<1x8x8xf32> to vector<1x8x8xbf16>
    %80 = vector.extract_strided_slice %71 {offsets = [0, 0, 64], sizes = [1, 8, 8], strides = [1, 1, 1]} : vector<1x8x96xf32> to vector<1x8x8xf32>
    %81 = arith.truncf %80 : vector<1x8x8xf32> to vector<1x8x8xbf16>
    "tpu.trace_start"() <{level = 10 : i32, message = "bqd,bkd->bqk"}> : () -> ()
    %cst_35 = arith.constant dense<0.000000e+00> : vector<1x8x8xf32>
    %82 = tpu.matmul %77, %79, %cst_35 {dimension_numbers = #tpu.dot_dimension_numbers<[2], [2], [1], [1], [0, 0, 0, 1, 1, 1], [0], [0]>} : vector<1x8x8xbf16>, vector<1x8x8xbf16>, vector<1x8x8xf32> -> vector<1x8x8xf32>
    "tpu.trace_stop"() : () -> ()
    %cst_36 = arith.constant 0.353552133 : f32
    %83 = vector.broadcast %cst_36 : f32 to vector<1x8x8xf32>
    %84 = arith.mulf %82, %83 : vector<1x8x8xf32>
    %cst_37 = arith.constant -1.000000e+30 : f32
    %85 = vector.broadcast %cst_37 : f32 to vector<1x8x8xf32>
    %86 = arith.select %75, %84, %85 : vector<1x8x8xi1>, vector<1x8x8xf32>
    %cst_38 = arith.constant dense<0xFF800000> : vector<1x8xf32>
    %87 = vector.multi_reduction <maximumf>, %86, %cst_38 [2] : vector<1x8x8xf32> to vector<1x8xf32>
    %88 = vector.shape_cast %87 : vector<1x8xf32> to vector<1x8x1xf32>
    %89 = vector.broadcast %88 : vector<1x8x1xf32> to vector<1x8x8xf32>
    %90 = arith.subf %86, %89 : vector<1x8x8xf32>
    %91 = math.exp %90 : vector<1x8x8xf32>
    %cst_39 = arith.constant dense<0.000000e+00> : vector<1x8xf32>
    %92 = vector.multi_reduction <add>, %91, %cst_39 [2] : vector<1x8x8xf32> to vector<1x8xf32>
    %93 = vector.shape_cast %92 : vector<1x8xf32> to vector<1x8x1xf32>
    %94 = tpu.reciprocal %93 {approx = true} : vector<1x8x1xf32> -> vector<1x8x1xf32>
    %95 = vector.broadcast %94 : vector<1x8x1xf32> to vector<1x8x8xf32>
    %96 = arith.mulf %91, %95 : vector<1x8x8xf32>
    %97 = arith.truncf %96 : vector<1x8x8xf32> to vector<1x8x8xbf16>
    "tpu.trace_start"() <{level = 10 : i32, message = "bqk,bkd->bqd"}> : () -> ()
    %cst_40 = arith.constant dense<0.000000e+00> : vector<1x8x8xf32>
    %98 = tpu.matmul %97, %81, %cst_40 {dimension_numbers = #tpu.dot_dimension_numbers<[2], [1], [1], [2], [0, 0, 0, 1, 1, 2], [0], [0]>} : vector<1x8x8xbf16>, vector<1x8x8xbf16>, vector<1x8x8xf32> -> vector<1x8x8xf32>
    "tpu.trace_stop"() : () -> ()
    %c0_41 = arith.constant 0 : index
    %c0_42 = arith.constant 0 : index
    %c0_43 = arith.constant 0 : index
    %99 = vector.load %arg15[%c0_41, %c0_42, %c0_43] : memref<1x8x32xf32, #tpu.memory_space<vmem>>, vector<1x8x8xf32>
    tpu.vector_store %arg15[%c0_41, %c0_42, %c0_43], %98 {strides = array<i32>} : memref<1x8x32xf32, #tpu.memory_space<vmem>>, vector<1x8x8xf32>,
    %100 = vector.extract_strided_slice %71 {offsets = [0, 0, 8], sizes = [1, 8, 8], strides = [1, 1, 1]} : vector<1x8x96xf32> to vector<1x8x8xf32>
    %101 = arith.truncf %100 : vector<1x8x8xf32> to vector<1x8x8xbf16>
    %102 = vector.extract_strided_slice %71 {offsets = [0, 0, 40], sizes = [1, 8, 8], strides = [1, 1, 1]} : vector<1x8x96xf32> to vector<1x8x8xf32>
    %103 = arith.truncf %102 : vector<1x8x8xf32> to vector<1x8x8xbf16>
    %104 = vector.extract_strided_slice %71 {offsets = [0, 0, 72], sizes = [1, 8, 8], strides = [1, 1, 1]} : vector<1x8x96xf32> to vector<1x8x8xf32>
    %105 = arith.truncf %104 : vector<1x8x8xf32> to vector<1x8x8xbf16>
    "tpu.trace_start"() <{level = 10 : i32, message = "bqd,bkd->bqk"}> : () -> ()
    %cst_44 = arith.constant dense<0.000000e+00> : vector<1x8x8xf32>
    %106 = tpu.matmul %101, %103, %cst_44 {dimension_numbers = #tpu.dot_dimension_numbers<[2], [2], [1], [1], [0, 0, 0, 1, 1, 1], [0], [0]>} : vector<1x8x8xbf16>, vector<1x8x8xbf16>, vector<1x8x8xf32> -> vector<1x8x8xf32>
    "tpu.trace_stop"() : () -> ()
    %cst_45 = arith.constant 0.353552133 : f32
    %107 = vector.broadcast %cst_45 : f32 to vector<1x8x8xf32>
    %108 = arith.mulf %106, %107 : vector<1x8x8xf32>
    %cst_46 = arith.constant -1.000000e+30 : f32
    %109 = vector.broadcast %cst_46 : f32 to vector<1x8x8xf32>
    %110 = arith.select %75, %108, %109 : vector<1x8x8xi1>, vector<1x8x8xf32>
    %cst_47 = arith.constant dense<0xFF800000> : vector<1x8xf32>
    %111 = vector.multi_reduction <maximumf>, %110, %cst_47 [2] : vector<1x8x8xf32> to vector<1x8xf32>
    %112 = vector.shape_cast %111 : vector<1x8xf32> to vector<1x8x1xf32>
    %113 = vector.broadcast %112 : vector<1x8x1xf32> to vector<1x8x8xf32>
    %114 = arith.subf %110, %113 : vector<1x8x8xf32>
    %115 = math.exp %114 : vector<1x8x8xf32>
    %cst_48 = arith.constant dense<0.000000e+00> : vector<1x8xf32>
    %116 = vector.multi_reduction <add>, %115, %cst_48 [2] : vector<1x8x8xf32> to vector<1x8xf32>
    %117 = vector.shape_cast %116 : vector<1x8xf32> to vector<1x8x1xf32>
    %118 = tpu.reciprocal %117 {approx = true} : vector<1x8x1xf32> -> vector<1x8x1xf32>
    %119 = vector.broadcast %118 : vector<1x8x1xf32> to vector<1x8x8xf32>
    %120 = arith.mulf %115, %119 : vector<1x8x8xf32>
    %121 = arith.truncf %120 : vector<1x8x8xf32> to vector<1x8x8xbf16>
    "tpu.trace_start"() <{level = 10 : i32, message = "bqk,bkd->bqd"}> : () -> ()
    %cst_49 = arith.constant dense<0.000000e+00> : vector<1x8x8xf32>
    %122 = tpu.matmul %121, %105, %cst_49 {dimension_numbers = #tpu.dot_dimension_numbers<[2], [1], [1], [2], [0, 0, 0, 1, 1, 2], [0], [0]>} : vector<1x8x8xbf16>, vector<1x8x8xbf16>, vector<1x8x8xf32> -> vector<1x8x8xf32>
    "tpu.trace_stop"() : () -> ()
    %c0_50 = arith.constant 0 : index
    %c0_51 = arith.constant 0 : index
    %c8 = arith.constant 8 : index
    %123 = vector.load %arg15[%c0_50, %c0_51, %c8] : memref<1x8x32xf32, #tpu.memory_space<vmem>>, vector<1x8x8xf32>
    tpu.vector_store %arg15[%c0_50, %c0_51, %c8], %122 {strides = array<i32>} : memref<1x8x32xf32, #tpu.memory_space<vmem>>, vector<1x8x8xf32>,
    %124 = vector.extract_strided_slice %71 {offsets = [0, 0, 16], sizes = [1, 8, 8], strides = [1, 1, 1]} : vector<1x8x96xf32> to vector<1x8x8xf32>
    %125 = arith.truncf %124 : vector<1x8x8xf32> to vector<1x8x8xbf16>
    %126 = vector.extract_strided_slice %71 {offsets = [0, 0, 48], sizes = [1, 8, 8], strides = [1, 1, 1]} : vector<1x8x96xf32> to vector<1x8x8xf32>
    %127 = arith.truncf %126 : vector<1x8x8xf32> to vector<1x8x8xbf16>
    %128 = vector.extract_strided_slice %71 {offsets = [0, 0, 80], sizes = [1, 8, 8], strides = [1, 1, 1]} : vector<1x8x96xf32> to vector<1x8x8xf32>
    %129 = arith.truncf %128 : vector<1x8x8xf32> to vector<1x8x8xbf16>
    "tpu.trace_start"() <{level = 10 : i32, message = "bqd,bkd->bqk"}> : () -> ()
    %cst_52 = arith.constant dense<0.000000e+00> : vector<1x8x8xf32>
    %130 = tpu.matmul %125, %127, %cst_52 {dimension_numbers = #tpu.dot_dimension_numbers<[2], [2], [1], [1], [0, 0, 0, 1, 1, 1], [0], [0]>} : vector<1x8x8xbf16>, vector<1x8x8xbf16>, vector<1x8x8xf32> -> vector<1x8x8xf32>
    "tpu.trace_stop"() : () -> ()
    %cst_53 = arith.constant 0.353552133 : f32
    %131 = vector.broadcast %cst_53 : f32 to vector<1x8x8xf32>
    %132 = arith.mulf %130, %131 : vector<1x8x8xf32>
    %cst_54 = arith.constant -1.000000e+30 : f32
    %133 = vector.broadcast %cst_54 : f32 to vector<1x8x8xf32>
    %134 = arith.select %75, %132, %133 : vector<1x8x8xi1>, vector<1x8x8xf32>
    %cst_55 = arith.constant dense<0xFF800000> : vector<1x8xf32>
    %135 = vector.multi_reduction <maximumf>, %134, %cst_55 [2] : vector<1x8x8xf32> to vector<1x8xf32>
    %136 = vector.shape_cast %135 : vector<1x8xf32> to vector<1x8x1xf32>
    %137 = vector.broadcast %136 : vector<1x8x1xf32> to vector<1x8x8xf32>
    %138 = arith.subf %134, %137 : vector<1x8x8xf32>
    %139 = math.exp %138 : vector<1x8x8xf32>
    %cst_56 = arith.constant dense<0.000000e+00> : vector<1x8xf32>
    %140 = vector.multi_reduction <add>, %139, %cst_56 [2] : vector<1x8x8xf32> to vector<1x8xf32>
    %141 = vector.shape_cast %140 : vector<1x8xf32> to vector<1x8x1xf32>
    %142 = tpu.reciprocal %141 {approx = true} : vector<1x8x1xf32> -> vector<1x8x1xf32>
    %143 = vector.broadcast %142 : vector<1x8x1xf32> to vector<1x8x8xf32>
    %144 = arith.mulf %139, %143 : vector<1x8x8xf32>
    %145 = arith.truncf %144 : vector<1x8x8xf32> to vector<1x8x8xbf16>
    "tpu.trace_start"() <{level = 10 : i32, message = "bqk,bkd->bqd"}> : () -> ()
    %cst_57 = arith.constant dense<0.000000e+00> : vector<1x8x8xf32>
    %146 = tpu.matmul %145, %129, %cst_57 {dimension_numbers = #tpu.dot_dimension_numbers<[2], [1], [1], [2], [0, 0, 0, 1, 1, 2], [0], [0]>} : vector<1x8x8xbf16>, vector<1x8x8xbf16>, vector<1x8x8xf32> -> vector<1x8x8xf32>
    "tpu.trace_stop"() : () -> ()
    %c0_58 = arith.constant 0 : index
    %c0_59 = arith.constant 0 : index
    %c16 = arith.constant 16 : index
    %147 = vector.load %arg15[%c0_58, %c0_59, %c16] : memref<1x8x32xf32, #tpu.memory_space<vmem>>, vector<1x8x8xf32>
    tpu.vector_store %arg15[%c0_58, %c0_59, %c16], %146 {strides = array<i32>} : memref<1x8x32xf32, #tpu.memory_space<vmem>>, vector<1x8x8xf32>,
    %148 = vector.extract_strided_slice %71 {offsets = [0, 0, 24], sizes = [1, 8, 8], strides = [1, 1, 1]} : vector<1x8x96xf32> to vector<1x8x8xf32>
    %149 = arith.truncf %148 : vector<1x8x8xf32> to vector<1x8x8xbf16>
    %150 = vector.extract_strided_slice %71 {offsets = [0, 0, 56], sizes = [1, 8, 8], strides = [1, 1, 1]} : vector<1x8x96xf32> to vector<1x8x8xf32>
    %151 = arith.truncf %150 : vector<1x8x8xf32> to vector<1x8x8xbf16>
    %152 = vector.extract_strided_slice %71 {offsets = [0, 0, 88], sizes = [1, 8, 8], strides = [1, 1, 1]} : vector<1x8x96xf32> to vector<1x8x8xf32>
    %153 = arith.truncf %152 : vector<1x8x8xf32> to vector<1x8x8xbf16>
    "tpu.trace_start"() <{level = 10 : i32, message = "bqd,bkd->bqk"}> : () -> ()
    %cst_60 = arith.constant dense<0.000000e+00> : vector<1x8x8xf32>
    %154 = tpu.matmul %149, %151, %cst_60 {dimension_numbers = #tpu.dot_dimension_numbers<[2], [2], [1], [1], [0, 0, 0, 1, 1, 1], [0], [0]>} : vector<1x8x8xbf16>, vector<1x8x8xbf16>, vector<1x8x8xf32> -> vector<1x8x8xf32>
    "tpu.trace_stop"() : () -> ()
    %cst_61 = arith.constant 0.353552133 : f32
    %155 = vector.broadcast %cst_61 : f32 to vector<1x8x8xf32>
    %156 = arith.mulf %154, %155 : vector<1x8x8xf32>
    %cst_62 = arith.constant -1.000000e+30 : f32
    %157 = vector.broadcast %cst_62 : f32 to vector<1x8x8xf32>
    %158 = arith.select %75, %156, %157 : vector<1x8x8xi1>, vector<1x8x8xf32>
    %cst_63 = arith.constant dense<0xFF800000> : vector<1x8xf32>
    %159 = vector.multi_reduction <maximumf>, %158, %cst_63 [2] : vector<1x8x8xf32> to vector<1x8xf32>
    %160 = vector.shape_cast %159 : vector<1x8xf32> to vector<1x8x1xf32>
    %161 = vector.broadcast %160 : vector<1x8x1xf32> to vector<1x8x8xf32>
    %162 = arith.subf %158, %161 : vector<1x8x8xf32>
    %163 = math.exp %162 : vector<1x8x8xf32>
    %cst_64 = arith.constant dense<0.000000e+00> : vector<1x8xf32>
    %164 = vector.multi_reduction <add>, %163, %cst_64 [2] : vector<1x8x8xf32> to vector<1x8xf32>
    %165 = vector.shape_cast %164 : vector<1x8xf32> to vector<1x8x1xf32>
    %166 = tpu.reciprocal %165 {approx = true} : vector<1x8x1xf32> -> vector<1x8x1xf32>
    %167 = vector.broadcast %166 : vector<1x8x1xf32> to vector<1x8x8xf32>
    %168 = arith.mulf %163, %167 : vector<1x8x8xf32>
    %169 = arith.truncf %168 : vector<1x8x8xf32> to vector<1x8x8xbf16>
    "tpu.trace_start"() <{level = 10 : i32, message = "bqk,bkd->bqd"}> : () -> ()
    %cst_65 = arith.constant dense<0.000000e+00> : vector<1x8x8xf32>
    %170 = tpu.matmul %169, %153, %cst_65 {dimension_numbers = #tpu.dot_dimension_numbers<[2], [1], [1], [2], [0, 0, 0, 1, 1, 2], [0], [0]>} : vector<1x8x8xbf16>, vector<1x8x8xbf16>, vector<1x8x8xf32> -> vector<1x8x8xf32>
    "tpu.trace_stop"() : () -> ()
    %c0_66 = arith.constant 0 : index
    %c0_67 = arith.constant 0 : index
    %c24 = arith.constant 24 : index
    %171 = vector.load %arg15[%c0_66, %c0_67, %c24] : memref<1x8x32xf32, #tpu.memory_space<vmem>>, vector<1x8x8xf32>
    tpu.vector_store %arg15[%c0_66, %c0_67, %c24], %170 {strides = array<i32>} : memref<1x8x32xf32, #tpu.memory_space<vmem>>, vector<1x8x8xf32>,
    %c0_68 = arith.constant 0 : index
    %c0_69 = arith.constant 0 : index
    %c0_70 = arith.constant 0 : index
    %172 = vector.load %arg15[%c0_68, %c0_69, %c0_70] : memref<1x8x32xf32, #tpu.memory_space<vmem>>, vector<1x8x32xf32>
    %173 = vector.shape_cast %172 : vector<1x8x32xf32> to vector<8x32xf32>
    %174 = arith.truncf %173 : vector<8x32xf32> to vector<8x32xbf16>
    %c0_71 = arith.constant 0 : index
    %c0_72 = arith.constant 0 : index
    %175 = vector.load %arg12[%c0_71, %c0_72] : memref<32x32xbf16, #tpu.memory_space<vmem>>, vector<32x32xbf16>
    %cst_73 = arith.constant dense<0.000000e+00> : vector<8x32xf32>
    %176 = tpu.matmul %174, %175, %cst_73 {dimension_numbers = #tpu.dot_dimension_numbers<[1], [0], [0], [1], [0, 0, 1, 1], [], []>} : vector<8x32xbf16>, vector<32x32xbf16>, vector<8x32xf32> -> vector<8x32xf32>
    %c0_74 = arith.constant 0 : index
    %c0_75 = arith.constant 0 : index
    %177 = vector.load %arg13[%c0_74, %c0_75] : memref<1x32xf32, #tpu.memory_space<vmem>>, vector<1x32xf32>
    %178 = vector.broadcast %177 : vector<1x32xf32> to vector<8x32xf32>
    %179 = arith.addf %176, %178 : vector<8x32xf32>
    %180 = arith.addf %40, %179 : vector<8x32xf32>
    %181 = vector.shape_cast %180 : vector<8x32xf32> to vector<1x8x32xf32>
    %c0_76 = arith.constant 0 : index
    %c0_77 = arith.constant 0 : index
    %c0_78 = arith.constant 0 : index
    %182 = vector.load %arg14[%c0_76, %c0_77, %c0_78] : memref<1x8x32xf32, #tpu.memory_space<vmem>>, vector<1x8x32xf32>
    tpu.vector_store %arg14[%c0_76, %c0_77, %c0_78], %181 {strides = array<i32>} : memref<1x8x32xf32, #tpu.memory_space<vmem>>, vector<1x8x32xf32>,
    return
  }
  func.func @transform_0(%arg0: i32) -> (i32, i32, i32) {
    %c0_i32 = arith.constant 0 : i32
    %c0_i32_0 = arith.constant 0 : i32
    %c0_i32_1 = arith.constant 0 : i32
    return %arg0, %c0_i32, %c0_i32_0 : i32, i32, i32
  }
  func.func @transform_1(%arg0: i32) -> (i32, i32) {
    %c0_i32 = arith.constant 0 : i32
    %c0_i32_0 = arith.constant 0 : i32
    %c0_i32_1 = arith.constant 0 : i32
    return %c0_i32, %c0_i32_0 : i32, i32
  }
  func.func @transform_2(%arg0: i32) -> (i32, i32) {
    %c0_i32 = arith.constant 0 : i32
    %c0_i32_0 = arith.constant 0 : i32
    %c0_i32_1 = arith.constant 0 : i32
    return %c0_i32, %c0_i32_0 : i32, i32
  }
  func.func @transform_3(%arg0: i32) -> (i32, i32) {
    %c0_i32 = arith.constant 0 : i32
    %c0_i32_0 = arith.constant 0 : i32
    %c0_i32_1 = arith.constant 0 : i32
    return %c0_i32, %c0_i32_0 : i32, i32
  }
  func.func @transform_4(%arg0: i32) -> (i32, i32) {
    %c0_i32 = arith.constant 0 : i32
    %c0_i32_0 = arith.constant 0 : i32
    %c0_i32_1 = arith.constant 0 : i32
    return %c0_i32, %c0_i32_0 : i32, i32
  }
  func.func @transform_5(%arg0: i32) -> (i32, i32) {
    %c0_i32 = arith.constant 0 : i32
    %c0_i32_0 = arith.constant 0 : i32
    %c0_i32_1 = arith.constant 0 : i32
    return %c0_i32, %c0_i32_0 : i32, i32
  }
  func.func @transform_6(%arg0: i32) -> (i32, i32) {
    %c0_i32 = arith.constant 0 : i32
    %c0_i32_0 = arith.constant 0 : i32
    %c0_i32_1 = arith.constant 0 : i32
    return %c0_i32, %c0_i32_0 : i32, i32
  }
  func.func @transform_7(%arg0: i32) -> (i32, i32) {
    %c0_i32 = arith.constant 0 : i32
    %c0_i32_0 = arith.constant 0 : i32
    %c0_i32_1 = arith.constant 0 : i32
    return %c0_i32, %c0_i32_0 : i32, i32
  }
  func.func @transform_8(%arg0: i32) -> (i32, i32) {
    %c0_i32 = arith.constant 0 : i32
    %c0_i32_0 = arith.constant 0 : i32
    %c0_i32_1 = arith.constant 0 : i32
    return %c0_i32, %c0_i32_0 : i32, i32
  }
  func.func @transform_9(%arg0: i32) -> (i32, i32) {
    %c0_i32 = arith.constant 0 : i32
    %c0_i32_0 = arith.constant 0 : i32
    %c0_i32_1 = arith.constant 0 : i32
    return %c0_i32, %c0_i32_0 : i32, i32
  }
  func.func @transform_10(%arg0: i32) -> (i32, i32) {
    %c0_i32 = arith.constant 0 : i32
    %c0_i32_0 = arith.constant 0 : i32
    %c0_i32_1 = arith.constant 0 : i32
    return %c0_i32, %c0_i32_0 : i32, i32
  }
  func.func @transform_11(%arg0: i32) -> (i32, i32) {
    %c0_i32 = arith.constant 0 : i32
    %c0_i32_0 = arith.constant 0 : i32
    %c0_i32_1 = arith.constant 0 : i32
    return %c0_i32, %c0_i32_0 : i32, i32
  }
  func.func @transform_12(%arg0: i32) -> (i32, i32) {
    %c0_i32 = arith.constant 0 : i32
    %c0_i32_0 = arith.constant 0 : i32
    %c0_i32_1 = arith.constant 0 : i32
    return %c0_i32, %c0_i32_0 : i32, i32
  }
  func.func @transform_13(%arg0: i32) -> (i32, i32, i32) {
    %c0_i32 = arith.constant 0 : i32
    %c0_i32_0 = arith.constant 0 : i32
    %c0_i32_1 = arith.constant 0 : i32
    return %arg0, %c0_i32, %c0_i32_0 : i32, i32, i32
  }
}

</mosaic_0001>

<llo_original>
// kernel: _lambda_.5
$region0: #{_lambda_.5}
  #allocation0 [shape = 'u32[]', space=smem, size = 0x4, offset = 0x4, fixed_abs, tag = 'smem constant byte address 0x4 - core index']
  #allocation1 [shape = 'u32[72,128]{1,0:T(1,128)}', space=vmem, size = 0x9000, scoped, tag = 'internal scratch']
  #allocation2 [shape = 'bf16[16,32]{1,0:T(8,128)(2,1)}', space=vmem, size = 0x1000, scoped, tag = 'scratch operand']
  %s0 = inlined_call_operand.vmem [shape: f32[16,32], index: 0, kind: input, shape index: {}]
  %s1 = inlined_call_operand.vmem [shape: f32[1,32], index: 1, kind: input, shape index: {}]
  %s2 = inlined_call_operand.vmem [shape: f32[1,32], index: 2, kind: input, shape index: {}]
  %s3 = inlined_call_operand.vmem [shape: bf16[32,64], index: 3, kind: input, shape index: {}]
  %s4 = inlined_call_operand.vmem [shape: f32[1,64], index: 4, kind: input, shape index: {}]
  %s5 = inlined_call_operand.hbm [shape: f32[16,64], index: 5, kind: output, shape index: {}]
  %s6 = sld [smem:[#allocation0]]
  $region34: #{_lambda_.5} parent=0
    _
  %s8 = ssub.s32 1, %s6
  %s9 = scalar_select 0, %s8, %s6
  $region1: #{_lambda_.5} parent=0
    #allocation3 [shape = 'u8[8192]{0}', space=vmem, size = 0x2000, scoped, tag = 'output window, operand 0, single buffered']
    #allocation4 [shape = 's32[1]{0}', space=sflag, size = 0x4, scoped, tag = 'scoped memory for _lambda_.5']
    %10 = vsyncpa [#allocation4], 0
    // Predicated region
    $region2: #{_lambda_.5} parent=1 // pred_check
      _
    $region3: #{_lambda_.5} parent=1 // pred_check_branch
      %12 = sbr.rel (0) target = $region5
    $region4: #{_lambda_.5} parent=1 // pred_region
      _
    $region5: #{_lambda_.5} parent=1 // pred_fallthru
      _
    // Predicated region
    $region6: #{_lambda_.5} parent=1 // pred_check
      _
    $region7: #{_lambda_.5} parent=1 // pred_check_branch
      %14 = sbr.rel (0) target = $region9
    $region8: #{_lambda_.5} parent=1 // pred_region
      _
    $region9: #{_lambda_.5} parent=1 // pred_fallthru
      _
    // Predicated region
    $region10: #{_lambda_.5} parent=1 // pred_check
      _
    $region11: #{_lambda_.5} parent=1 // pred_check_branch
      %16 = sbr.rel (0) target = $region13
    $region12: #{_lambda_.5} parent=1 // pred_region
      _
    $region13: #{_lambda_.5} parent=1 // pred_fallthru
      _
    // Predicated region
    $region14: #{_lambda_.5} parent=1 // pred_check
      _
    $region15: #{_lambda_.5} parent=1 // pred_check_branch
      %18 = sbr.rel (0) target = $region17
    $region16: #{_lambda_.5} parent=1 // pred_region
      _
    $region17: #{_lambda_.5} parent=1 // pred_fallthru
      _
    // Predicated region
    $region18: #{_lambda_.5} parent=1 // pred_check
      _
    $region19: #{_lambda_.5} parent=1 // pred_check_branch
      %20 = sbr.rel (0) target = $region21
    $region20: #{_lambda_.5} parent=1 // pred_region
      _
    $region21: #{_lambda_.5} parent=1 // pred_fallthru
      _
    %p22 = scmp.eq.s32.totalorder 0, 0
    // Predicated region
    $region22: #{_lambda_.5} parent=1 // pred_check
      %p23 = pneg %p22
    $region23: #{_lambda_.5} parent=1 // pred_check_branch
      %25 = sbr.rel (%p23) target = $region25
    $region24: #{_lambda_.5} parent=1 // pred_region
      %v26 = vld [vmem:[%s0] sm:$0xff]
      %v27 = vld [vmem:[%s0 + $0x8] sm:$0xff]
      %v28 = vld [vmem:[%s1] sm:$0x1]
      %v29 = vld [vmem:[%s2] sm:$0x1]
      %vm30 = vcmask 261120
      %v31 = vsel %vm30, %v26, 0.0
      %32 = vadd.xlane.f32.xlu0 %v31
      %v33 = vpop.xlane.xlu0 %32
      %v34 = vsel %vm30, %v27, 0.0
      %35 = vadd.xlane.f32.xlu0 %v34
      %v36 = vpop.xlane.xlu0 %35
      %v37 = vrcp.pop 32.0
      %v38 = vmul.f32 32.0, %v37
      %v39 = vsub.f32 1.0, %v38
      %v40 = vmul.f32 %v37, %v39
      %v41 = vadd.f32 %v37, %v40
      %vm42 = vweird.f32 %v37
      %v43 = vsel %vm42, %v37, %v41
      %v44 = vmul.f32 %v33, %v43
      %v45 = vmul.f32 %v36, %v43
      %v46 = vsub.f32 %v26, %v44
      %v47 = vsub.f32 %v27, %v45
      %v48 = vmul.f32 %v46, %v46
      %v49 = vmul.f32 %v47, %v47
      %v50 = vsel %vm30, %v48, 0.0
      %51 = vadd.xlane.f32.xlu0 %v50
      %v52 = vpop.xlane.xlu0 %51
      %v53 = vsel %vm30, %v49, 0.0
      %54 = vadd.xlane.f32.xlu0 %v53
      %v55 = vpop.xlane.xlu0 %54
      %v56 = vmul.f32 %v52, %v43
      %v57 = vmul.f32 %v55, %v43
      %v58 = vadd.f32 %v56, 1e-05
      %v59 = vadd.f32 %v57, 1e-05
      %v60 = vrsqrt.pop %v58
      %v61 = vmul.f32 %v60, %v58
      %v62 = vmul.f32 %v61, %v60
      %v63 = vmul.f32 0.5, %v62
      %v64 = vsub.f32 1.5, %v63
      %v65 = vmul.f32 %v60, %v64
      %vm66 = vweird.f32 %v58
      %vm67 = vweird.f32 %v60
      %vm68 = vmor %vm66, %vm67
      %v69 = vsel %vm68, %v60, %v65
      %v70 = vrsqrt.pop %v59
      %v71 = vmul.f32 %v70, %v59
      %v72 = vmul.f32 %v71, %v70
      %v73 = vmul.f32 0.5, %v72
      %v74 = vsub.f32 1.5, %v73
      %v75 = vmul.f32 %v70, %v74
      %vm76 = vweird.f32 %v59
      %vm77 = vweird.f32 %v70
      %vm78 = vmor %vm76, %vm77
      %v79 = vsel %vm78, %v70, %v75
      %v80 = vmul.f32 %v46, %v69
      %v81 = vmul.f32 %v47, %v79
      %v83 = vperm.slane %v28, 0
      %v85 = vmul.f32 %v80, %v83
      %v86 = vmul.f32 %v81, %v83
      %v88 = vperm.slane %v29, 0
      %v90 = vadd.f32 %v85, %v88
      %v91 = vadd.f32 %v86, %v88
      %v92 = vpack.c.bf16 %v90, %v90
      %v93 = vpack.c.bf16 %v91, %v91
      %vm94 = vcmask 257024
      %95 = vst.msk [vmem:[#allocation2] sm:$0xf] %vm94, %v92
      %96 = vst.msk [vmem:[#allocation2 + $0x4] sm:$0xf] %vm94, %v93
    $region25: #{_lambda_.5} parent=1 // pred_fallthru
      _
    %v97 = vld [vmem:[#allocation2] sm:$0xf]
    %v98 = vld [vmem:[#allocation2 + $0x4] sm:$0xf]
    %v99 = vld [vmem:[%s3] sm:$0xf]
    %v100 = vld [vmem:[%s3 + $0x4] sm:$0xf]
    %v101 = vld [vmem:[%s3 + $0x8] sm:$0xf]
    %v102 = vld [vmem:[%s3 + $0xc] sm:$0xf]
    %v103 = vld [vmem:[%s4] sm:$0x1]
    %v105 = vperm.slane %v103, 0
    %v109 = vunpack.c.l.b16 %v97
    %v110 = vunpack.c.l.b16 %v98
    %v111 = vpack.c.b16 %v110, %v109
    %v116 = vunpack.c.l.b16 %v99
    %v117 = vunpack.c.l.b16 %v100
    %v118 = vunpack.c.l.b16 %v101
    %v119 = vunpack.c.l.b16 %v102
    %v120 = vpack.c.b16 %v117, %v116
    %v121 = vpack.c.b16 %v119, %v118
    %vm124 = vcmask 261120
    %v126 = vsel %vm124, %v111, 0
    %128 = vmatpush.bf16.msra.mxu0 0
    %129 = vmatpush.bf16.msra.mxu0 0
    %130 = vmatpush.bf16.msra.mxu0 0
    %131 = vmatpush.bf16.msra.mxu0 0
    %132 = vmatpush.bf16.msra.mxu0 0
    %133 = vmatpush.bf16.msra.mxu0 0
    %134 = vmatpush.bf16.msra.mxu0 %v121
    %135 = vmatpush.bf16.msra.mxu0 %v120
    %136 = vmatmul.bf16.gmra.mxu0 %v126
    %v137 = vpop.f32.mrf.mxu0
    %v138 = vadd.f32 %v105, %v137
    %v139 = vpop.f32.mrf.mxu0
    %v140 = vadd.f32 %v105, %v139
    %141 = vdwg.mxu0
    %vm142 = vcmask 523264
    %143 = vst.msk [vmem:[#allocation3] sm:$0xff] %vm142, %v138
    %144 = vst.msk [vmem:[#allocation3 + $0x8] sm:$0xff] %vm142, %v140
    // Predicated region
    $region26: #{_lambda_.5} parent=1 // pred_check
      _
    $region27: #{_lambda_.5} parent=1 // pred_check_branch
      %146 = sbr.rel (0) target = $region29
    $region28: #{_lambda_.5} parent=1 // pred_region
      %148 = vsyncadd [#allocation4], 0
      %s149 = sshll.u32 [#allocation3], 4
      %s150 = int_to_ptr.vmem [resolvable:$true] %s149
      %s151 = sshll.u32 %s5, 4
      %s152 = int_to_ptr.hbm [resolvable:$true] %s151
      %157 = dma.vmem_to_hbm [thread:$0]  %s150, 256, %s152, [#allocation4], 128, 128, 8
    $region29: #{_lambda_.5} parent=1 // pred_fallthru
      _
    // Predicated region
    $region30: #{_lambda_.5} parent=1 // pred_check
      _
    $region31: #{_lambda_.5} parent=1 // pred_check_branch
      %159 = sbr.rel (0) target = $region33
    $region32: #{_lambda_.5} parent=1 // pred_region
      %161 = dma.done [#allocation4], 256
    $region33: #{_lambda_.5} parent=1 // pred_fallthru
      _
    %162 = vsyncpa [#allocation4], 1

// kernel: _lambda_.3
$region0: #{_lambda_.3}
  #allocation0 [shape = 'u32[]', space=smem, size = 0x4, offset = 0x4, fixed_abs, tag = 'smem constant byte address 0x4 - core index']
  #allocation1 [shape = 'u32[72,128]{1,0:T(1,128)}', space=vmem, size = 0x9000, scoped, tag = 'internal scratch']
  #allocation2 [shape = 'f32[1,8,32]{2,1,0:T(8,128)}', space=vmem, size = 0x1000, scoped, tag = 'scratch operand']
  %s0 = inlined_call_operand.vmem [shape: f32[2,8,32], index: 0, kind: input, shape index: {}, may-alias: {0,13}]
  %s1 = inlined_call_operand.vmem [shape: f32[1,32], index: 1, kind: input, shape index: {}]
  %s2 = inlined_call_operand.vmem [shape: f32[1,32], index: 2, kind: input, shape index: {}]
  %s3 = inlined_call_operand.vmem [shape: bf16[32,128], index: 3, kind: input, shape index: {}]
  %s4 = inlined_call_operand.vmem [shape: f32[1,128], index: 4, kind: input, shape index: {}]
  %s5 = inlined_call_operand.vmem [shape: bf16[128,32], index: 5, kind: input, shape index: {}]
  %s6 = inlined_call_operand.vmem [shape: f32[1,32], index: 6, kind: input, shape index: {}]
  %s7 = inlined_call_operand.vmem [shape: f32[1,32], index: 7, kind: input, shape index: {}]
  %s8 = inlined_call_operand.vmem [shape: f32[1,32], index: 8, kind: input, shape index: {}]
  %s9 = inlined_call_operand.vmem [shape: bf16[32,96], index: 9, kind: input, shape index: {}]
  %s10 = inlined_call_operand.vmem [shape: f32[1,96], index: 10, kind: input, shape index: {}]
  %s11 = inlined_call_operand.vmem [shape: bf16[32,32], index: 11, kind: input, shape index: {}]
  %s12 = inlined_call_operand.vmem [shape: f32[1,32], index: 12, kind: input, shape index: {}]
  %s13 = inlined_call_operand.vmem [shape: f32[2,8,32], index: 13, kind: output, shape index: {}, may-alias: {0,13}]
  %s14 = sld [smem:[#allocation0]]
  $region85: #{_lambda_.3} parent=0
    _
  %s16 = ssub.s32 1, %s14
  %s17 = scalar_select 0, %s16, %s14
  loop: start=0, step=1, limit=4
  $region2: #{_lambda_.3} parent=0 // loop_pre_header
    _
  $region3: #{_lambda_.3} parent=0 // loop_header
    %s19 = sphi 0, %s23
    %p20 = scmp.ge.s32.totalorder %s19, 4
    %s29 = sphi 0, %s31
    %s32 = sphi 0, %s29
    %s33 = sphi 0, %s32
    %s49 = sphi 0, %s33
    %s53 = sphi 0, %s53
    %s55 = sphi 0, %s53
    %s56 = sphi 0, %s55
    %s70 = sphi 0, %s56
    %s74 = sphi 0, %s74
    %s76 = sphi 0, %s74
    %s77 = sphi 0, %s76
    %s91 = sphi 0, %s77
    %s95 = sphi 0, %s95
    %s97 = sphi 0, %s95
    %s98 = sphi 0, %s97
    %s112 = sphi 0, %s98
    %s116 = sphi 0, %s116
    %s118 = sphi 0, %s116
    %s119 = sphi 0, %s118
    %s133 = sphi 0, %s119
    %s137 = sphi 0, %s137
    %s139 = sphi 0, %s137
    %s140 = sphi 0, %s139
    %s154 = sphi 0, %s140
    %s158 = sphi 0, %s158
    %s160 = sphi 0, %s158
    %s161 = sphi 0, %s160
    %s175 = sphi 0, %s161
    %s179 = sphi 0, %s179
    %s181 = sphi 0, %s179
    %s182 = sphi 0, %s181
    %s196 = sphi 0, %s182
    %s200 = sphi 0, %s200
    %s202 = sphi 0, %s200
    %s203 = sphi 0, %s202
    %s217 = sphi 0, %s203
    %s221 = sphi 0, %s221
    %s223 = sphi 0, %s221
    %s224 = sphi 0, %s223
    %s238 = sphi 0, %s224
    %s242 = sphi 0, %s242
    %s244 = sphi 0, %s242
    %s245 = sphi 0, %s244
    %s259 = sphi 0, %s245
    %s263 = sphi 0, %s263
    %s265 = sphi 0, %s263
    %s266 = sphi 0, %s265
    %s280 = sphi 0, %s266
    %s284 = sphi 0, %s284
    %s286 = sphi 0, %s284
    %s287 = sphi 0, %s286
    %s301 = sphi 0, %s287
    %s307 = sphi 0, %s309
    %s310 = sphi 0, %s307
    %s311 = sphi 0, %s310
    %s327 = sphi 0, %s311
  $region4: #{_lambda_.3} parent=0 // loop_header_branch
    %22 = sbr.rel (%p20) target = $region8
  $region5: #{_lambda_.3} parent=0 // loop_body
    %s24 = ssub.s32 %s19, 1
    %s25 = ssub.s32 %s19, 2
    %s26 = sadd.s32 %s19, 1
    %s27 = ssub.s32 %s19, %s26
    %p28 = scmp.eq.s32.totalorder %s27, 0
    %s30 = sadd.s32 %s29, 1
    %s31 = scalar_select %p28, %s29, %s30
    %p34 = pneg %p28
    %p35 = scmp.eq.s32.totalorder %s19, 1
    %p36 = por %p34, %p35
    %p37 = scmp.ne.s32.totalorder %s29, %s32
    %p38 = scmp.eq.s32.totalorder %s19, 0
    %p39 = por %p37, %p38
    %p40 = scmp.ne.s32.totalorder %s29, %s32
    %p41 = scmp.eq.s32.totalorder %s24, 1
    %p42 = por %p40, %p41
    %p43 = scmp.ne.s32.totalorder %s32, %s33
    %p44 = scmp.eq.s32.totalorder %s24, 0
    %p45 = por %p43, %p44
    %p46 = scmp.ne.s32.totalorder %s32, %s33
    %p47 = scmp.eq.s32.totalorder %s25, 1
    %p48 = por %p46, %p47
    %p50 = scmp.ne.s32.totalorder %s33, %s49
    %p51 = scmp.eq.s32.totalorder %s25, 0
    %p52 = por %p50, %p51
    %s54 = sadd.s32 %s53, 1
    %p57 = scmp.eq.s32.totalorder %s19, 1
    %p58 = scmp.ne.s32.totalorder %s53, %s55
    %p59 = scmp.eq.s32.totalorder %s19, 0
    %p60 = por %p58, %p59
    %p61 = scmp.ne.s32.totalorder %s53, %s55
    %p62 = scmp.eq.s32.totalorder %s24, 1
    %p63 = por %p61, %p62
    %p64 = scmp.ne.s32.totalorder %s55, %s56
    %p65 = scmp.eq.s32.totalorder %s24, 0
    %p66 = por %p64, %p65
    %p67 = scmp.ne.s32.totalorder %s55, %s56
    %p68 = scmp.eq.s32.totalorder %s25, 1
    %p69 = por %p67, %p68
    %p71 = scmp.ne.s32.totalorder %s56, %s70
    %p72 = scmp.eq.s32.totalorder %s25, 0
    %p73 = por %p71, %p72
    %s75 = sadd.s32 %s74, 1
    %p78 = scmp.eq.s32.totalorder %s19, 1
    %p79 = scmp.ne.s32.totalorder %s74, %s76
    %p80 = scmp.eq.s32.totalorder %s19, 0
    %p81 = por %p79, %p80
    %p82 = scmp.ne.s32.totalorder %s74, %s76
    %p83 = scmp.eq.s32.totalorder %s24, 1
    %p84 = por %p82, %p83
    %p85 = scmp.ne.s32.totalorder %s76, %s77
    %p86 = scmp.eq.s32.totalorder %s24, 0
    %p87 = por %p85, %p86
    %p88 = scmp.ne.s32.totalorder %s76, %s77
    %p89 = scmp.eq.s32.totalorder %s25, 1
    %p90 = por %p88, %p89
    %p92 = scmp.ne.s32.totalorder %s77, %s91
    %p93 = scmp.eq.s32.totalorder %s25, 0
    %p94 = por %p92, %p93
    %s96 = sadd.s32 %s95, 1
    %p99 = scmp.eq.s32.totalorder %s19, 1
    %p100 = scmp.ne.s32.totalorder %s95, %s97
    %p101 = scmp.eq.s32.totalorder %s19, 0
    %p102 = por %p100, %p101
    %p103 = scmp.ne.s32.totalorder %s95, %s97
    %p104 = scmp.eq.s32.totalorder %s24, 1
    %p105 = por %p103, %p104
    %p106 = scmp.ne.s32.totalorder %s97, %s98
    %p107 = scmp.eq.s32.totalorder %s24, 0
    %p108 = por %p106, %p107
    %p109 = scmp.ne.s32.totalorder %s97, %s98
    %p110 = scmp.eq.s32.totalorder %s25, 1
    %p111 = por %p109, %p110
    %p113 = scmp.ne.s32.totalorder %s98, %s112
    %p114 = scmp.eq.s32.totalorder %s25, 0
    %p115 = por %p113, %p114
    %s117 = sadd.s32 %s116, 1
    %p120 = scmp.eq.s32.totalorder %s19, 1
    %p121 = scmp.ne.s32.totalorder %s116, %s118
    %p122 = scmp.eq.s32.totalorder %s19, 0
    %p123 = por %p121, %p122
    %p124 = scmp.ne.s32.totalorder %s116, %s118
    %p125 = scmp.eq.s32.totalorder %s24, 1
    %p126 = por %p124, %p125
    %p127 = scmp.ne.s32.totalorder %s118, %s119
    %p128 = scmp.eq.s32.totalorder %s24, 0
    %p129 = por %p127, %p128
    %p130 = scmp.ne.s32.totalorder %s118, %s119
    %p131 = scmp.eq.s32.totalorder %s25, 1
    %p132 = por %p130, %p131
    %p134 = scmp.ne.s32.totalorder %s119, %s133
    %p135 = scmp.eq.s32.totalorder %s25, 0
    %p136 = por %p134, %p135
    %s138 = sadd.s32 %s137, 1
    %p141 = scmp.eq.s32.totalorder %s19, 1
    %p142 = scmp.ne.s32.totalorder %s137, %s139
    %p143 = scmp.eq.s32.totalorder %s19, 0
    %p144 = por %p142, %p143
    %p145 = scmp.ne.s32.totalorder %s137, %s139
    %p146 = scmp.eq.s32.totalorder %s24, 1
    %p147 = por %p145, %p146
    %p148 = scmp.ne.s32.totalorder %s139, %s140
    %p149 = scmp.eq.s32.totalorder %s24, 0
    %p150 = por %p148, %p149
    %p151 = scmp.ne.s32.totalorder %s139, %s140
    %p152 = scmp.eq.s32.totalorder %s25, 1
    %p153 = por %p151, %p152
    %p155 = scmp.ne.s32.totalorder %s140, %s154
    %p156 = scmp.eq.s32.totalorder %s25, 0
    %p157 = por %p155, %p156
    %s159 = sadd.s32 %s158, 1
    %p162 = scmp.eq.s32.totalorder %s19, 1
    %p163 = scmp.ne.s32.totalorder %s158, %s160
    %p164 = scmp.eq.s32.totalorder %s19, 0
    %p165 = por %p163, %p164
    %p166 = scmp.ne.s32.totalorder %s158, %s160
    %p167 = scmp.eq.s32.totalorder %s24, 1
    %p168 = por %p166, %p167
    %p169 = scmp.ne.s32.totalorder %s160, %s161
    %p170 = scmp.eq.s32.totalorder %s24, 0
    %p171 = por %p169, %p170
    %p172 = scmp.ne.s32.totalorder %s160, %s161
    %p173 = scmp.eq.s32.totalorder %s25, 1
    %p174 = por %p172, %p173
    %p176 = scmp.ne.s32.totalorder %s161, %s175
    %p177 = scmp.eq.s32.totalorder %s25, 0
    %p178 = por %p176, %p177
    %s180 = sadd.s32 %s179, 1
    %p183 = scmp.eq.s32.totalorder %s19, 1
    %p184 = scmp.ne.s32.totalorder %s179, %s181
    %p185 = scmp.eq.s32.totalorder %s19, 0
    %p186 = por %p184, %p185
    %p187 = scmp.ne.s32.totalorder %s179, %s181
    %p188 = scmp.eq.s32.totalorder %s24, 1
    %p189 = por %p187, %p188
    %p190 = scmp.ne.s32.totalorder %s181, %s182
    %p191 = scmp.eq.s32.totalorder %s24, 0
    %p192 = por %p190, %p191
    %p193 = scmp.ne.s32.totalorder %s181, %s182
    %p194 = scmp.eq.s32.totalorder %s25, 1
    %p195 = por %p193, %p194
    %p197 = scmp.ne.s32.totalorder %s182, %s196
    %p198 = scmp.eq.s32.totalorder %s25, 0
    %p199 = por %p197, %p198
    %s201 = sadd.s32 %s200, 1
    %p204 = scmp.eq.s32.totalorder %s19, 1
    %p205 = scmp.ne.s32.totalorder %s200, %s202
    %p206 = scmp.eq.s32.totalorder %s19, 0
    %p207 = por %p205, %p206
    %p208 = scmp.ne.s32.totalorder %s200, %s202
    %p209 = scmp.eq.s32.totalorder %s24, 1
    %p210 = por %p208, %p209
    %p211 = scmp.ne.s32.totalorder %s202, %s203
    %p212 = scmp.eq.s32.totalorder %s24, 0
    %p213 = por %p211, %p212
    %p214 = scmp.ne.s32.totalorder %s202, %s203
    %p215 = scmp.eq.s32.totalorder %s25, 1
    %p216 = por %p214, %p215
    %p218 = scmp.ne.s32.totalorder %s203, %s217
    %p219 = scmp.eq.s32.totalorder %s25, 0
    %p220 = por %p218, %p219
    %s222 = sadd.s32 %s221, 1
    %p225 = scmp.eq.s32.totalorder %s19, 1
    %p226 = scmp.ne.s32.totalorder %s221, %s223
    %p227 = scmp.eq.s32.totalorder %s19, 0
    %p228 = por %p226, %p227
    %p229 = scmp.ne.s32.totalorder %s221, %s223
    %p230 = scmp.eq.s32.totalorder %s24, 1
    %p231 = por %p229, %p230
    %p232 = scmp.ne.s32.totalorder %s223, %s224
    %p233 = scmp.eq.s32.totalorder %s24, 0
    %p234 = por %p232, %p233
    %p235 = scmp.ne.s32.totalorder %s223, %s224
    %p236 = scmp.eq.s32.totalorder %s25, 1
    %p237 = por %p235, %p236
    %p239 = scmp.ne.s32.totalorder %s224, %s238
    %p240 = scmp.eq.s32.totalorder %s25, 0
    %p241 = por %p239, %p240
    %s243 = sadd.s32 %s242, 1
    %p246 = scmp.eq.s32.totalorder %s19, 1
    %p247 = scmp.ne.s32.totalorder %s242, %s244
    %p248 = scmp.eq.s32.totalorder %s19, 0
    %p249 = por %p247, %p248
    %p250 = scmp.ne.s32.totalorder %s242, %s244
    %p251 = scmp.eq.s32.totalorder %s24, 1
    %p252 = por %p250, %p251
    %p253 = scmp.ne.s32.totalorder %s244, %s245
    %p254 = scmp.eq.s32.totalorder %s24, 0
    %p255 = por %p253, %p254
    %p256 = scmp.ne.s32.totalorder %s244, %s245
    %p257 = scmp.eq.s32.totalorder %s25, 1
    %p258 = por %p256, %p257
    %p260 = scmp.ne.s32.totalorder %s245, %s259
    %p261 = scmp.eq.s32.totalorder %s25, 0
    %p262 = por %p260, %p261
    %s264 = sadd.s32 %s263, 1
    %p267 = scmp.eq.s32.totalorder %s19, 1
    %p268 = scmp.ne.s32.totalorder %s263, %s265
    %p269 = scmp.eq.s32.totalorder %s19, 0
    %p270 = por %p268, %p269
    %p271 = scmp.ne.s32.totalorder %s263, %s265
    %p272 = scmp.eq.s32.totalorder %s24, 1
    %p273 = por %p271, %p272
    %p274 = scmp.ne.s32.totalorder %s265, %s266
    %p275 = scmp.eq.s32.totalorder %s24, 0
    %p276 = por %p274, %p275
    %p277 = scmp.ne.s32.totalorder %s265, %s266
    %p278 = scmp.eq.s32.totalorder %s25, 1
    %p279 = por %p277, %p278
    %p281 = scmp.ne.s32.totalorder %s266, %s280
    %p282 = scmp.eq.s32.totalorder %s25, 0
    %p283 = por %p281, %p282
    %s285 = sadd.s32 %s284, 1
    %p288 = scmp.eq.s32.totalorder %s19, 1
    %p289 = scmp.ne.s32.totalorder %s284, %s286
    %p290 = scmp.eq.s32.totalorder %s19, 0
    %p291 = por %p289, %p290
    %p292 = scmp.ne.s32.totalorder %s284, %s286
    %p293 = scmp.eq.s32.totalorder %s24, 1
    %p294 = por %p292, %p293
    %p295 = scmp.ne.s32.totalorder %s286, %s287
    %p296 = scmp.eq.s32.totalorder %s24, 0
    %p297 = por %p295, %p296
    %p298 = scmp.ne.s32.totalorder %s286, %s287
    %p299 = scmp.eq.s32.totalorder %s25, 1
    %p300 = por %p298, %p299
    %p302 = scmp.ne.s32.totalorder %s287, %s301
    %p303 = scmp.eq.s32.totalorder %s25, 0
    %p304 = por %p302, %p303
    %s305 = ssub.s32 %s19, %s26
    %p306 = scmp.eq.s32.totalorder %s305, 0
    %s308 = sadd.s32 %s307, 1
    %s309 = scalar_select %p306, %s307, %s308
    %p312 = pneg %p306
    %p313 = scmp.eq.s32.totalorder %s19, 1
    %p314 = por %p312, %p313
    %p315 = scmp.ne.s32.totalorder %s307, %s310
    %p316 = scmp.eq.s32.totalorder %s19, 0
    %p317 = por %p315, %p316
    %p318 = scmp.ne.s32.totalorder %s307, %s310
    %p319 = scmp.eq.s32.totalorder %s24, 1
    %p320 = por %p318, %p319
    %p321 = scmp.ne.s32.totalorder %s310, %s311
    %p322 = scmp.eq.s32.totalorder %s24, 0
    %p323 = por %p321, %p322
    %p324 = scmp.ne.s32.totalorder %s310, %s311
    %p325 = scmp.eq.s32.totalorder %s25, 1
    %p326 = por %p324, %p325
    %p328 = scmp.ne.s32.totalorder %s311, %s327
    %p329 = scmp.eq.s32.totalorder %s25, 0
    %p330 = por %p328, %p329
    %p331 = scmp.le.s32.totalorder 1, %s19
    %p332 = scmp.lt.s32.totalorder %s19, 3
    %p333 = pnand %p331, %p332
    %p334 = pneg %p333
    // Predicated region
    $region9: #{_lambda_.3} parent=5 // pred_check
      _
    $region10: #{_lambda_.3} parent=5 // pred_check_branch
      %336 = sbr.rel (%p333) target = $region12
    $region11: #{_lambda_.3} parent=5 // pred_region
      %s337 = ssub.s32 %s19, 1
      // Predicated region
      $region13: #{_lambda_.3} parent=11 // pred_check
        %p338 = pneg %p66
      $region14: #{_lambda_.3} parent=11 // pred_check_branch
        %340 = sbr.rel (%p338) target = $region16
      $region15: #{_lambda_.3} parent=11 // pred_region
        _
      $region16: #{_lambda_.3} parent=11 // pred_fallthru
        _
      // Predicated region
      $region17: #{_lambda_.3} parent=11 // pred_check
        %p341 = pneg %p87
      $region18: #{_lambda_.3} parent=11 // pred_check_branch
        %343 = sbr.rel (%p341) target = $region20
      $region19: #{_lambda_.3} parent=11 // pred_region
        _
      $region20: #{_lambda_.3} parent=11 // pred_fallthru
        _
      // Predicated region
      $region21: #{_lambda_.3} parent=11 // pred_check
        %p344 = pneg %p108
      $region22: #{_lambda_.3} parent=11 // pred_check_branch
        %346 = sbr.rel (%p344) target = $region24
      $region23: #{_lambda_.3} parent=11 // pred_region
        _
      $region24: #{_lambda_.3} parent=11 // pred_fallthru
        _
      // Predicated region
      $region25: #{_lambda_.3} parent=11 // pred_check
        %p347 = pneg %p129
      $region26: #{_lambda_.3} parent=11 // pred_check_branch
        %349 = sbr.rel (%p347) target = $region28
      $region27: #{_lambda_.3} parent=11 // pred_region
        _
      $region28: #{_lambda_.3} parent=11 // pred_fallthru
        _
      // Predicated region
      $region29: #{_lambda_.3} parent=11 // pred_check
        %p350 = pneg %p150
      $region30: #{_lambda_.3} parent=11 // pred_check_branch
        %352 = sbr.rel (%p350) target = $region32
      $region31: #{_lambda_.3} parent=11 // pred_region
        _
      $region32: #{_lambda_.3} parent=11 // pred_fallthru
        _
      // Predicated region
      $region33: #{_lambda_.3} parent=11 // pred_check
        %p353 = pneg %p171
      $region34: #{_lambda_.3} parent=11 // pred_check_branch
        %355 = sbr.rel (%p353) target = $region36
      $region35: #{_lambda_.3} parent=11 // pred_region
        _
      $region36: #{_lambda_.3} parent=11 // pred_fallthru
        _
      // Predicated region
      $region37: #{_lambda_.3} parent=11 // pred_check
        %p356 = pneg %p192
      $region38: #{_lambda_.3} parent=11 // pred_check_branch
        %358 = sbr.rel (%p356) target = $region40
      $region39: #{_lambda_.3} parent=11 // pred_region
        _
      $region40: #{_lambda_.3} parent=11 // pred_fallthru
        _
      // Predicated region
      $region41: #{_lambda_.3} parent=11 // pred_check
        %p359 = pneg %p213
      $region42: #{_lambda_.3} parent=11 // pred_check_branch
        %361 = sbr.rel (%p359) target = $region44
      $region43: #{_lambda_.3} parent=11 // pred_region
        _
      $region44: #{_lambda_.3} parent=11 // pred_fallthru
        _
      // Predicated region
      $region45: #{_lambda_.3} parent=11 // pred_check
        %p362 = pneg %p234
      $region46: #{_lambda_.3} parent=11 // pred_check_branch
        %364 = sbr.rel (%p362) target = $region48
      $region47: #{_lambda_.3} parent=11 // pred_region
        _
      $region48: #{_lambda_.3} parent=11 // pred_fallthru
        _
      // Predicated region
      $region49: #{_lambda_.3} parent=11 // pred_check
        %p365 = pneg %p255
      $region50: #{_lambda_.3} parent=11 // pred_check_branch
        %367 = sbr.rel (%p365) target = $region52
      $region51: #{_lambda_.3} parent=11 // pred_region
        _
      $region52: #{_lambda_.3} parent=11 // pred_fallthru
        _
      // Predicated region
      $region53: #{_lambda_.3} parent=11 // pred_check
        %p368 = pneg %p276
      $region54: #{_lambda_.3} parent=11 // pred_check_branch
        %370 = sbr.rel (%p368) target = $region56
      $region55: #{_lambda_.3} parent=11 // pred_region
        _
      $region56: #{_lambda_.3} parent=11 // pred_fallthru
        _
      // Predicated region
      $region57: #{_lambda_.3} parent=11 // pred_check
        %p371 = pneg %p297
      $region58: #{_lambda_.3} parent=11 // pred_check_branch
        %373 = sbr.rel (%p371) target = $region60
      $region59: #{_lambda_.3} parent=11 // pred_region
        _
      $region60: #{_lambda_.3} parent=11 // pred_fallthru
        _
    $region12: #{_lambda_.3} parent=5 // pred_fallthru
      _
    %p374 = scmp.lt.s32.totalorder %s19, 2
    // Predicated region
    $region61: #{_lambda_.3} parent=5 // pred_check
      %p375 = pneg %p374
    $region62: #{_lambda_.3} parent=5 // pred_check_branch
      %377 = sbr.rel (%p375) target = $region64
    $region63: #{_lambda_.3} parent=5 // pred_region
      // Predicated region
      $region65: #{_lambda_.3} parent=63 // pred_check
        %p378 = pneg %p39
      $region66: #{_lambda_.3} parent=63 // pred_check_branch
        %380 = sbr.rel (%p378) target = $region68
      $region67: #{_lambda_.3} parent=63 // pred_region
        %p381 = scmp.lt.s32.totalorder %s19, 1
        %s382 = scalar_select %p381, %s19, 1
        %s383 = smul.addr %s382, 8
        %s384 = scalar_lea.vmem %s0, %s383
      $region68: #{_lambda_.3} parent=63 // pred_fallthru
        _
    $region64: #{_lambda_.3} parent=5 // pred_fallthru
      _
    %p385 = scmp.le.s32.totalorder 1, %s19
    %p386 = scmp.lt.s32.totalorder %s19, 3
    %p387 = pnand %p385, %p386
    %p388 = pneg %p387
    // Predicated region
    $region69: #{_lambda_.3} parent=5 // pred_check
      _
    $region70: #{_lambda_.3} parent=5 // pred_check_branch
      %390 = sbr.rel (%p387) target = $region72
    $region71: #{_lambda_.3} parent=5 // pred_region
      %s391 = ssub.s32 %s19, 1
      %p392 = scmp.lt.s32.totalorder %s24, 1
      %s393 = scalar_select %p392, %s24, 1
      %s394 = smul.addr %s393, 8
      %s395 = scalar_lea.vmem %s0, %s394
      %p396 = pneg %p45
      %p397 = pneg %p42
      %p398 = pneg %p66
      %p399 = pneg %p63
      %p400 = pneg %p87
      %p401 = pneg %p84
      %p402 = pneg %p108
      %p403 = pneg %p105
      %p404 = pneg %p129
      %p405 = pneg %p126
      %p406 = pneg %p150
      %p407 = pneg %p147
      %p408 = pneg %p171
      %p409 = pneg %p168
      %p410 = pneg %p192
      %p411 = pneg %p189
      %p412 = pneg %p213
      %p413 = pneg %p210
      %p414 = pneg %p234
      %p415 = pneg %p231
      %p416 = pneg %p255
      %p417 = pneg %p252
      %p418 = pneg %p276
      %p419 = pneg %p273
      %p420 = pneg %p297
      %p421 = pneg %p294
      %p422 = pneg %p323
      %p423 = pneg %p320
      %p424 = scmp.lt.s32.totalorder %s24, 1
      %s425 = scalar_select %p424, %s24, 1
      %s426 = smul.addr %s425, 8
      %s427 = scalar_lea.vmem %s13, %s426
      %p428 = scmp.lt.s32.totalorder %s24, 1
      %s429 = scalar_select %p428, %s24, 1
      %s430 = smul.addr %s429, 8
      %s431 = scalar_lea.vmem %s0, %s430
      %p432 = scmp.lt.s32.totalorder %s24, 1
      %s433 = scalar_select %p432, %s24, 1
      %s434 = smul.addr %s433, 8
      %s435 = scalar_lea.vmem %s13, %s434
      %v437 = vld [vmem:[%s431] sm:$0xff]
      %v438 = vld [vmem:[%s1] sm:$0x1]
      %v439 = vld [vmem:[%s2] sm:$0x1]
      %vm440 = vcmask 261120
      %v441 = vsel %vm440, %v437, 0.0
      %442 = vadd.xlane.f32.xlu0 %v441
      %v443 = vpop.xlane.xlu0 %442
      %v444 = vrcp.pop 32.0
      %v445 = vmul.f32 32.0, %v444
      %v446 = vsub.f32 1.0, %v445
      %v447 = vmul.f32 %v444, %v446
      %v448 = vadd.f32 %v444, %v447
      %vm449 = vweird.f32 %v444
      %v450 = vsel %vm449, %v444, %v448
      %v451 = vmul.f32 %v443, %v450
      %v452 = vsub.f32 %v437, %v451
      %v453 = vmul.f32 %v452, %v452
      %v454 = vsel %vm440, %v453, 0.0
      %455 = vadd.xlane.f32.xlu0 %v454
      %v456 = vpop.xlane.xlu0 %455
      %v457 = vmul.f32 %v456, %v450
      %v458 = vadd.f32 %v457, 1e-05
      %v459 = vrsqrt.pop %v458
      %v460 = vmul.f32 %v459, %v458
      %v461 = vmul.f32 %v460, %v459
      %v462 = vmul.f32 0.5, %v461
      %v463 = vsub.f32 1.5, %v462
      %v464 = vmul.f32 %v459, %v463
      %vm465 = vweird.f32 %v458
      %vm466 = vweird.f32 %v459
      %vm467 = vmor %vm465, %vm466
      %v468 = vsel %vm467, %v459, %v464
      %v469 = vmul.f32 %v452, %v468
      %v471 = vperm.slane %v438, 0
      %v473 = vmul.f32 %v469, %v471
      %v475 = vperm.slane %v439, 0
      %v477 = vadd.f32 %v473, %v475
      %v478 = vpack.c.bf16 %v477, %v477
      %v479 = vld [vmem:[%s3] sm:$0xf]
      %v480 = vld [vmem:[%s3 + $0x4] sm:$0xf]
      %v481 = vld [vmem:[%s3 + $0x8] sm:$0xf]
      %v482 = vld [vmem:[%s3 + $0xc] sm:$0xf]
      %v483 = vld [vmem:[%s4] sm:$0x1]
      %v485 = vperm.slane %v483, 0
      %v491 = vunpack.c.l.b16 %v479
      %v492 = vunpack.c.l.b16 %v480
      %v493 = vunpack.c.l.b16 %v481
      %v494 = vunpack.c.l.b16 %v482
      %v495 = vpack.c.b16 %v492, %v491
      %v496 = vpack.c.b16 %v494, %v493
      %v500 = vsel %vm440, %v478, 0
      %502 = vmatpush.bf16.msra.mxu0 0
      %503 = vmatpush.bf16.msra.mxu0 0
      %504 = vmatpush.bf16.msra.mxu0 0
      %505 = vmatpush.bf16.msra.mxu0 0
      %506 = vmatpush.bf16.msra.mxu0 0
      %507 = vmatpush.bf16.msra.mxu0 0
      %508 = vmatpush.bf16.msra.mxu0 %v496
      %509 = vmatpush.bf16.msra.mxu0 %v495
      %510 = vmatmul.bf16.gmra.mxu0 %v500
      %v511 = vpop.f32.mrf.mxu0
      %v512 = vadd.f32 %v485, %v511
      %v513 = vpop.f32.mrf.mxu0
      %514 = vdwg.mxu0
      %v515 = vmax.f32 %v512, 0.0
      %v516 = vpack.c.bf16 %v515, %v515
      %v517 = vld [vmem:[%s5] sm:$0xf]
      %v518 = vld [vmem:[%s5 + $0x4] sm:$0xf]
      %v519 = vld [vmem:[%s5 + $0x8] sm:$0xf]
      %v520 = vld [vmem:[%s5 + $0xc] sm:$0xf]
      %v521 = vld [vmem:[%s5 + $0x10] sm:$0xf]
      %v522 = vld [vmem:[%s5 + $0x14] sm:$0xf]
      %v523 = vld [vmem:[%s5 + $0x18] sm:$0xf]
      %v524 = vld [vmem:[%s5 + $0x1c] sm:$0xf]
      %v525 = vld [vmem:[%s5 + $0x20] sm:$0xf]
      %v526 = vld [vmem:[%s5 + $0x24] sm:$0xf]
      %v527 = vld [vmem:[%s5 + $0x28] sm:$0xf]
      %v528 = vld [vmem:[%s5 + $0x2c] sm:$0xf]
      %v529 = vld [vmem:[%s5 + $0x30] sm:$0xf]
      %v530 = vld [vmem:[%s5 + $0x34] sm:$0xf]
      %v531 = vld [vmem:[%s5 + $0x38] sm:$0xf]
      %v532 = vld [vmem:[%s5 + $0x3c] sm:$0xf]
      %v533 = vld [vmem:[%s6] sm:$0x1]
      %v535 = vperm.slane %v533, 0
      %v553 = vunpack.c.l.b16 %v517
      %v554 = vunpack.c.l.b16 %v518
      %v555 = vunpack.c.l.b16 %v519
      %v556 = vunpack.c.l.b16 %v520
      %v557 = vunpack.c.l.b16 %v521
      %v558 = vunpack.c.l.b16 %v522
      %v559 = vunpack.c.l.b16 %v523
      %v560 = vunpack.c.l.b16 %v524
      %v561 = vunpack.c.l.b16 %v525
      %v562 = vunpack.c.l.b16 %v526
      %v563 = vunpack.c.l.b16 %v527
      %v564 = vunpack.c.l.b16 %v528
      %v565 = vunpack.c.l.b16 %v529
      %v566 = vunpack.c.l.b16 %v530
      %v567 = vunpack.c.l.b16 %v531
      %v568 = vunpack.c.l.b16 %v532
      %v569 = vpack.c.b16 %v554, %v553
      %v570 = vpack.c.b16 %v556, %v555
      %v571 = vpack.c.b16 %v558, %v557
      %v572 = vpack.c.b16 %v560, %v559
      %v573 = vpack.c.b16 %v562, %v561
      %v574 = vpack.c.b16 %v564, %v563
      %v575 = vpack.c.b16 %v566, %v565
      %v576 = vpack.c.b16 %v568, %v567
      %585 = vmatpush.bf16.msra.mxu0 %v576
      %586 = vmatpush.bf16.msra.mxu0 %v575
      %587 = vmatpush.bf16.msra.mxu0 %v574
      %588 = vmatpush.bf16.msra.mxu0 %v573
      %589 = vmatpush.bf16.msra.mxu0 %v572
      %590 = vmatpush.bf16.msra.mxu0 %v571
      %591 = vmatpush.bf16.msra.mxu0 %v570
      %592 = vmatpush.bf16.msra.mxu0 %v569
      %593 = vmatmul.bf16.gmra.mxu0 %v516
      %v594 = vpop.f32.mrf.mxu0
      %v595 = vadd.f32 %v535, %v594
      %v596 = vpop.f32.mrf.mxu0
      %597 = vdwg.mxu0
      %v598 = vadd.f32 %v437, %v595
      %v599 = vld [vmem:[%s7] sm:$0x1]
      %v600 = vld [vmem:[%s8] sm:$0x1]
      %v601 = vsel %vm440, %v598, 0.0
      %602 = vadd.xlane.f32.xlu0 %v601
      %v603 = vpop.xlane.xlu0 %602
      %v604 = vmul.f32 %v603, %v450
      %v605 = vsub.f32 %v598, %v604
      %v606 = vmul.f32 %v605, %v605
      %v607 = vsel %vm440, %v606, 0.0
      %608 = vadd.xlane.f32.xlu0 %v607
      %v609 = vpop.xlane.xlu0 %608
      %v610 = vmul.f32 %v609, %v450
      %v611 = vadd.f32 %v610, 1e-05
      %v612 = vrsqrt.pop %v611
      %v613 = vmul.f32 %v612, %v611
      %v614 = vmul.f32 %v613, %v612
      %v615 = vmul.f32 0.5, %v614
      %v616 = vsub.f32 1.5, %v615
      %v617 = vmul.f32 %v612, %v616
      %vm618 = vweird.f32 %v611
      %vm619 = vweird.f32 %v612
      %vm620 = vmor %vm618, %vm619
      %v621 = vsel %vm620, %v612, %v617
      %v622 = vmul.f32 %v605, %v621
      %v624 = vperm.slane %v599, 0
      %v626 = vmul.f32 %v622, %v624
      %v628 = vperm.slane %v600, 0
      %v630 = vadd.f32 %v626, %v628
      %v631 = vpack.c.bf16 %v630, %v630
      %v632 = vld [vmem:[%s9] sm:$0xf]
      %v633 = vld [vmem:[%s9 + $0x4] sm:$0xf]
      %v634 = vld [vmem:[%s9 + $0x8] sm:$0xf]
      %v635 = vld [vmem:[%s9 + $0xc] sm:$0xf]
      %v636 = vld [vmem:[%s10] sm:$0x1]
      %v638 = vperm.slane %v636, 0
      %v644 = vunpack.c.l.b16 %v632
      %v645 = vunpack.c.l.b16 %v633
      %v646 = vunpack.c.l.b16 %v634
      %v647 = vunpack.c.l.b16 %v635
      %v648 = vpack.c.b16 %v645, %v644
      %v649 = vpack.c.b16 %v647, %v646
      %v653 = vsel %vm440, %v631, 0
      %655 = vmatpush.bf16.msra.mxu0 0
      %656 = vmatpush.bf16.msra.mxu0 0
      %657 = vmatpush.bf16.msra.mxu0 0
      %658 = vmatpush.bf16.msra.mxu0 0
      %659 = vmatpush.bf16.msra.mxu0 0
      %660 = vmatpush.bf16.msra.mxu0 0
      %661 = vmatpush.bf16.msra.mxu0 %v649
      %662 = vmatpush.bf16.msra.mxu0 %v648
      %663 = vmatmul.bf16.gmra.mxu0 %v653
      %v664 = vpop.f32.mrf.mxu0
      %v665 = vadd.f32 %v638, %v664
      %v666 = vpop.f32.mrf.mxu0
      %667 = vdwg.mxu0
      %v668 = vlaneseq
      %v669 = vshrl.u32 %v668, 7
      %v670 = vlaneseq
      %v671 = vand.u32 %v670, 127
      %vm672 = vcmp.ge.s32.totalorder %v669, %v671
      %v673 = vpack.c.bf16 %v665, %v665
      %v675 = vunpack.c.l.b16 %v673
      %v676 = vpack.c.b16 %v675, %v675
      %677 = vrot.lane.b32.xlu0 %v676, 96
      %v678 = vpop.permute.xlu0 %677
      %vm679 = vcmask 64512
      %v681 = vsel %vm679, %v673, 0
      %v684 = vsel %vm679, %v678, 0
      %686 = vmatpush.bf16.xpose.msra.mxu0 0
      %687 = vmatpush.bf16.xpose.msra.mxu0 0
      %688 = vmatpush.bf16.xpose.msra.mxu0 0
      %689 = vmatpush.bf16.xpose.msra.mxu0 0
      %690 = vmatpush.bf16.xpose.msra.mxu0 0
      %691 = vmatpush.bf16.xpose.msra.mxu0 0
      %692 = vmatpush.bf16.xpose.msra.mxu0 0
      %693 = vmatpush.bf16.xpose.msra.mxu0 %v684
      %694 = vmatmul.bf16.gmra.mxu0 %v681
      %v695 = vpop.f32.mrf.mxu0
      %v696 = vadd.f32 0.0, %v695
      %v697 = vpop.f32.mrf.mxu0
      %698 = vdwg.mxu0
      %v699 = vmul.f32 %v696, 0.35355213
      %v700 = vsel %vm672, %v699, -1e+30
      %v701 = vsel %vm679, %v700, -inf
      %702 = vmax.xlane.f32.xlu0 %v701
      %v703 = vpop.xlane.xlu0 %702
      %v704 = vsub.f32 %v700, %v703
      %v705 = vmul.f32 %v704, 1.442695
      %v706 = vpow.pop %v705
      %v707 = vsel %vm679, %v706, 0.0
      %708 = vadd.xlane.f32.xlu0 %v707
      %v709 = vpop.xlane.xlu0 %708
      %v710 = vrcp.pop %v709
      %v711 = vmul.f32 %v706, %v710
      %v712 = vpack.c.bf16 %v711, %v711
      %713 = vrot.lane.b32.xlu0 %v676, 64
      %v714 = vpop.permute.xlu0 %713
      %v716 = vsel %vm679, %v712, 0
      %vm718 = vcmask 1043456
      %v720 = vsel %vm718, %v714, 0
      %722 = vmatpush.bf16.msra.mxu0 0
      %723 = vmatpush.bf16.msra.mxu0 0
      %724 = vmatpush.bf16.msra.mxu0 0
      %725 = vmatpush.bf16.msra.mxu0 0
      %726 = vmatpush.bf16.msra.mxu0 0
      %727 = vmatpush.bf16.msra.mxu0 0
      %728 = vmatpush.bf16.msra.mxu0 0
      %729 = vmatpush.bf16.msra.mxu0 %v720
      %730 = vmatmul.bf16.gmra.mxu0 %v716
      %v731 = vpop.f32.mrf.mxu0
      %v732 = vadd.f32 0.0, %v731
      %v733 = vpop.f32.mrf.mxu0
      %734 = vdwg.mxu0
      %735 = vst.msk [vmem:[#allocation2] sm:$0xff] %vm679, %v732
      %736 = vrot.lane.b32.xlu0 %v676, 120
      %v737 = vpop.permute.xlu0 %736
      %738 = vrot.lane.b32.xlu0 %v676, 88
      %v739 = vpop.permute.xlu0 %738
      %v741 = vsel %vm679, %v737, 0
      %v744 = vsel %vm679, %v739, 0
      %746 = vmatpush.bf16.xpose.msra.mxu0 0
      %747 = vmatpush.bf16.xpose.msra.mxu0 0
      %748 = vmatpush.bf16.xpose.msra.mxu0 0
      %749 = vmatpush.bf16.xpose.msra.mxu0 0
      %750 = vmatpush.bf16.xpose.msra.mxu0 0
      %751 = vmatpush.bf16.xpose.msra.mxu0 0
      %752 = vmatpush.bf16.xpose.msra.mxu0 0
      %753 = vmatpush.bf16.xpose.msra.mxu0 %v744
      %754 = vmatmul.bf16.gmra.mxu0 %v741
      %v755 = vpop.f32.mrf.mxu0
      %v756 = vadd.f32 0.0, %v755
      %v757 = vpop.f32.mrf.mxu0
      %758 = vdwg.mxu0
      %v759 = vmul.f32 %v756, 0.35355213
      %v760 = vsel %vm672, %v759, -1e+30
      %v761 = vsel %vm679, %v760, -inf
      %762 = vmax.xlane.f32.xlu0 %v761
      %v763 = vpop.xlane.xlu0 %762
      %v764 = vsub.f32 %v760, %v763
      %v765 = vmul.f32 %v764, 1.442695
      %v766 = vpow.pop %v765
      %v767 = vsel %vm679, %v766, 0.0
      %768 = vadd.xlane.f32.xlu0 %v767
      %v769 = vpop.xlane.xlu0 %768
      %v770 = vrcp.pop %v769
      %v771 = vmul.f32 %v766, %v770
      %v772 = vpack.c.bf16 %v771, %v771
      %773 = vrot.lane.b32.xlu0 %v676, 56
      %v774 = vpop.permute.xlu0 %773
      %v776 = vsel %vm679, %v772, 0
      %v779 = vsel %vm718, %v774, 0
      %781 = vmatpush.bf16.msra.mxu0 0
      %782 = vmatpush.bf16.msra.mxu0 0
      %783 = vmatpush.bf16.msra.mxu0 0
      %784 = vmatpush.bf16.msra.mxu0 0
      %785 = vmatpush.bf16.msra.mxu0 0
      %786 = vmatpush.bf16.msra.mxu0 0
      %787 = vmatpush.bf16.msra.mxu0 0
      %788 = vmatpush.bf16.msra.mxu0 %v779
      %789 = vmatmul.bf16.gmra.mxu0 %v776
      %v790 = vpop.f32.mrf.mxu0
      %v791 = vadd.f32 0.0, %v790
      %v792 = vpop.f32.mrf.mxu0
      %793 = vdwg.mxu0
      %795 = vrot.lane.b32.xlu0 %v791, 8
      %v796 = vpop.permute.xlu0 %795
      %vm798 = vcmask 130112
      %799 = vst.msk [vmem:[#allocation2] sm:$0xff] %vm798, %v796
      %800 = vrot.lane.b32.xlu0 %v676, 112
      %v801 = vpop.permute.xlu0 %800
      %802 = vrot.lane.b32.xlu0 %v676, 80
      %v803 = vpop.permute.xlu0 %802
      %v805 = vsel %vm679, %v801, 0
      %v808 = vsel %vm679, %v803, 0
      %810 = vmatpush.bf16.xpose.msra.mxu0 0
      %811 = vmatpush.bf16.xpose.msra.mxu0 0
      %812 = vmatpush.bf16.xpose.msra.mxu0 0
      %813 = vmatpush.bf16.xpose.msra.mxu0 0
      %814 = vmatpush.bf16.xpose.msra.mxu0 0
      %815 = vmatpush.bf16.xpose.msra.mxu0 0
      %816 = vmatpush.bf16.xpose.msra.mxu0 0
      %817 = vmatpush.bf16.xpose.msra.mxu0 %v808
      %818 = vmatmul.bf16.gmra.mxu0 %v805
      %v819 = vpop.f32.mrf.mxu0
      %v820 = vadd.f32 0.0, %v819
      %v821 = vpop.f32.mrf.mxu0
      %822 = vdwg.mxu0
      %v823 = vmul.f32 %v820, 0.35355213
      %v824 = vsel %vm672, %v823, -1e+30
      %v825 = vsel %vm679, %v824, -inf
      %826 = vmax.xlane.f32.xlu0 %v825
      %v827 = vpop.xlane.xlu0 %826
      %v828 = vsub.f32 %v824, %v827
      %v829 = vmul.f32 %v828, 1.442695
      %v830 = vpow.pop %v829
      %v831 = vsel %vm679, %v830, 0.0
      %832 = vadd.xlane.f32.xlu0 %v831
      %v833 = vpop.xlane.xlu0 %832
      %v834 = vrcp.pop %v833
      %v835 = vmul.f32 %v830, %v834
      %v836 = vpack.c.bf16 %v835, %v835
      %837 = vrot.lane.b32.xlu0 %v676, 48
      %v838 = vpop.permute.xlu0 %837
      %v840 = vsel %vm679, %v836, 0
      %v843 = vsel %vm718, %v838, 0
      %845 = vmatpush.bf16.msra.mxu0 0
      %846 = vmatpush.bf16.msra.mxu0 0
      %847 = vmatpush.bf16.msra.mxu0 0
      %848 = vmatpush.bf16.msra.mxu0 0
      %849 = vmatpush.bf16.msra.mxu0 0
      %850 = vmatpush.bf16.msra.mxu0 0
      %851 = vmatpush.bf16.msra.mxu0 0
      %852 = vmatpush.bf16.msra.mxu0 %v843
      %853 = vmatmul.bf16.gmra.mxu0 %v840
      %v854 = vpop.f32.mrf.mxu0
      %v855 = vadd.f32 0.0, %v854
      %v856 = vpop.f32.mrf.mxu0
      %857 = vdwg.mxu0
      %859 = vrot.lane.b32.xlu0 %v855, 16
      %v860 = vpop.permute.xlu0 %859
      %vm862 = vcmask 195712
      %863 = vst.msk [vmem:[#allocation2] sm:$0xff] %vm862, %v860
      %864 = vrot.lane.b32.xlu0 %v676, 104
      %v865 = vpop.permute.xlu0 %864
      %866 = vrot.lane.b32.xlu0 %v676, 72
      %v867 = vpop.permute.xlu0 %866
      %v869 = vsel %vm679, %v865, 0
      %v872 = vsel %vm679, %v867, 0
      %874 = vmatpush.bf16.xpose.msra.mxu0 0
      %875 = vmatpush.bf16.xpose.msra.mxu0 0
      %876 = vmatpush.bf16.xpose.msra.mxu0 0
      %877 = vmatpush.bf16.xpose.msra.mxu0 0
      %878 = vmatpush.bf16.xpose.msra.mxu0 0
      %879 = vmatpush.bf16.xpose.msra.mxu0 0
      %880 = vmatpush.bf16.xpose.msra.mxu0 0
      %881 = vmatpush.bf16.xpose.msra.mxu0 %v872
      %882 = vmatmul.bf16.gmra.mxu0 %v869
      %v883 = vpop.f32.mrf.mxu0
      %v884 = vadd.f32 0.0, %v883
      %v885 = vpop.f32.mrf.mxu0
      %886 = vdwg.mxu0
      %v887 = vmul.f32 %v884, 0.35355213
      %v888 = vsel %vm672, %v887, -1e+30
      %v889 = vsel %vm679, %v888, -inf
      %890 = vmax.xlane.f32.xlu0 %v889
      %v891 = vpop.xlane.xlu0 %890
      %v892 = vsub.f32 %v888, %v891
      %v893 = vmul.f32 %v892, 1.442695
      %v894 = vpow.pop %v893
      %v895 = vsel %vm679, %v894, 0.0
      %896 = vadd.xlane.f32.xlu0 %v895
      %v897 = vpop.xlane.xlu0 %896
      %v898 = vrcp.pop %v897
      %v899 = vmul.f32 %v894, %v898
      %v900 = vpack.c.bf16 %v899, %v899
      %901 = vrot.lane.b32.xlu0 %v676, 40
      %v902 = vpop.permute.xlu0 %901
      %v904 = vsel %vm679, %v900, 0
      %v907 = vsel %vm718, %v902, 0
      %909 = vmatpush.bf16.msra.mxu0 0
      %910 = vmatpush.bf16.msra.mxu0 0
      %911 = vmatpush.bf16.msra.mxu0 0
      %912 = vmatpush.bf16.msra.mxu0 0
      %913 = vmatpush.bf16.msra.mxu0 0
      %914 = vmatpush.bf16.msra.mxu0 0
      %915 = vmatpush.bf16.msra.mxu0 0
      %916 = vmatpush.bf16.msra.mxu0 %v907
      %917 = vmatmul.bf16.gmra.mxu0 %v904
      %v918 = vpop.f32.mrf.mxu0
      %v919 = vadd.f32 0.0, %v918
      %v920 = vpop.f32.mrf.mxu0
      %921 = vdwg.mxu0
      %923 = vrot.lane.b32.xlu0 %v919, 24
      %v924 = vpop.permute.xlu0 %923
      %vm926 = vcmask 261312
      %927 = vst.msk [vmem:[#allocation2] sm:$0xff] %vm926, %v924
      %v928 = vld [vmem:[#allocation2] sm:$0xff]
      %v929 = vpack.c.bf16 %v928, %v928
      %v930 = vld [vmem:[%s11] sm:$0xf]
      %v931 = vld [vmem:[%s11 + $0x4] sm:$0xf]
      %v932 = vld [vmem:[%s11 + $0x8] sm:$0xf]
      %v933 = vld [vmem:[%s11 + $0xc] sm:$0xf]
      %v934 = vld [vmem:[%s12] sm:$0x1]
      %v936 = vperm.slane %v934, 0
      %v942 = vunpack.c.l.b16 %v930
      %v943 = vunpack.c.l.b16 %v931
      %v944 = vunpack.c.l.b16 %v932
      %v945 = vunpack.c.l.b16 %v933
      %v946 = vpack.c.b16 %v943, %v942
      %v947 = vpack.c.b16 %v945, %v944
      %v951 = vsel %vm440, %v929, 0
      %953 = vmatpush.bf16.msra.mxu0 0
      %954 = vmatpush.bf16.msra.mxu0 0
      %955 = vmatpush.bf16.msra.mxu0 0
      %956 = vmatpush.bf16.msra.mxu0 0
      %957 = vmatpush.bf16.msra.mxu0 0
      %958 = vmatpush.bf16.msra.mxu0 0
      %959 = vmatpush.bf16.msra.mxu0 %v947
      %960 = vmatpush.bf16.msra.mxu0 %v946
      %961 = vmatmul.bf16.gmra.mxu0 %v951
      %v962 = vpop.f32.mrf.mxu0
      %v963 = vadd.f32 %v936, %v962
      %v964 = vpop.f32.mrf.mxu0
      %965 = vdwg.mxu0
      %v966 = vadd.f32 %v598, %v963
      %967 = vst.msk [vmem:[%s435] sm:$0xff] %vm440, %v966
      %p968 = scmp.lt.s32.totalorder %s24, 1
      %s969 = scalar_select %p968, %s24, 1
      %s970 = smul.addr %s969, 8
      %s971 = scalar_lea.vmem %s13, %s970
      // Predicated region
      $region73: #{_lambda_.3} parent=71 // pred_check
        %p972 = pneg %p320
      $region74: #{_lambda_.3} parent=71 // pred_check_branch
        %974 = sbr.rel (%p972) target = $region76
      $region75: #{_lambda_.3} parent=71 // pred_region
        _
      $region76: #{_lambda_.3} parent=71 // pred_fallthru
        _
    $region72: #{_lambda_.3} parent=5 // pred_fallthru
      _
    %p975 = scmp.le.s32.totalorder 2, %s19
    // Predicated region
    $region77: #{_lambda_.3} parent=5 // pred_check
      %p976 = pneg %p975
    $region78: #{_lambda_.3} parent=5 // pred_check_branch
      %978 = sbr.rel (%p976) target = $region80
    $region79: #{_lambda_.3} parent=5 // pred_region
      %s979 = ssub.s32 %s19, 2
      // Predicated region
      $region81: #{_lambda_.3} parent=79 // pred_check
        %p980 = pneg %p326
      $region82: #{_lambda_.3} parent=79 // pred_check_branch
        %982 = sbr.rel (%p980) target = $region84
      $region83: #{_lambda_.3} parent=79 // pred_region
        %p983 = scmp.lt.s32.totalorder %s25, 1
        %s984 = scalar_select %p983, %s25, 1
        %s985 = smul.addr %s984, 8
        %s986 = scalar_lea.vmem %s13, %s985
      $region84: #{_lambda_.3} parent=79 // pred_fallthru
        _
    $region80: #{_lambda_.3} parent=5 // pred_fallthru
      _
  $region6: #{_lambda_.3} parent=0 // loop_footer
    %s23 = sadd.s32 1, %s19
  $region7: #{_lambda_.3} parent=0 // loop_footer_branch
    %18 = sbr.rel target = $region3
  $region8: #{_lambda_.3} parent=0 // loop_exit
    _

</llo_original>
